<compile_context>
chip_gen: v7x
topology: tpu7x:2x2x1
jax: 0.10.0
libtpu: 0.0.40
codegen_flags: <defaults>
</compile_context>

<pallas_src>
import functools

import jax
import jax.numpy as jnp
from jax import lax
from jax.experimental import pallas as pl
from jax.experimental.pallas import tpu as pltpu


def _round_up(x, m):
    return ((x + m - 1) // m) * m


# ----------------------------------------------------------------------------
# Conv body: im2col (glue, channels-last) + Pallas matmul/bias/ReLU kernel
# ----------------------------------------------------------------------------
def _matmul_bias_relu_kernel(a_ref, b_ref, bias_ref, o_ref):
    acc = jnp.dot(a_ref[...], b_ref[...], preferred_element_type=jnp.float32)
    o_ref[...] = jnp.maximum(acc + bias_ref[...], 0.0).astype(o_ref.dtype)


def _im2col_nhwc(x, kh, kw, stride, pad):
    # x: (B, H, W, C) channels-last
    B, H, W, C = x.shape
    xp = jnp.pad(x, ((0, 0), (pad, pad), (pad, pad), (0, 0)))
    Ho = (H + 2 * pad - kh) // stride + 1
    Wo = (W + 2 * pad - kw) // stride + 1
    cols = []
    for i in range(kh):
        for j in range(kw):
            cols.append(xp[:, i:i + stride * Ho:stride, j:j + stride * Wo:stride, :])
    stacked = jnp.stack(cols, axis=3)                        # (B, Ho, Wo, kh*kw, C)
    patches = stacked.reshape(B * Ho * Wo, kh * kw * C)      # rows = NHWC-flat, cols = (kh, kw, C)
    return patches, Ho, Wo


def _pick_tm(M):
    # Single block when small (avoids the ~0.35us per-step overhead on 1-TC v5e/v6e); otherwise
    # split into >=2 "parallel" blocks so v7x's two TensorCores can both work on the conv matmul.
    if M <= 256:
        return M
    for tm in (512, 256, 128, 64, 32, 16, 8):
        if M % tm == 0 and M // tm >= 2:
            return tm
    return M


def conv2d_relu_nhwc(x, w, b, *, stride=2, pad=1, cout_pad=None):
    """3x3 conv + bias + ReLU; channels-last activations, PyTorch OIHW weights.

    Returns (B, Ho, Wo, Cp) bfloat16 with Cout zero-padded to `cout_pad` lanes so the next
    layer / ROI head always sees a lane-dense (multiple-of-128) channel axis.  MXU inputs are
    bf16, accumulation is f32, the store is bf16 (halves conv output HBM bytes).
    """
    B, H, W, Cin = x.shape
    Cout, wcin, kh, kw = w.shape
    assert wcin == Cin
    patches, Ho, Wo = _im2col_nhwc(x, kh, kw, stride, pad)                 # (M, K)
    wm = jnp.transpose(w, (2, 3, 1, 0)).reshape(kh * kw * Cin, Cout)       # rows match patch cols

    K = kh * kw * Cin
    Kp = _round_up(K, 128)                       # lane-aligned contraction dim
    Cp = cout_pad if cout_pad is not None else Cout
    patches = jnp.pad(patches, ((0, 0), (0, Kp - K))).astype(jnp.bfloat16)
    wm = jnp.pad(wm, ((0, Kp - K), (0, Cp - Cout))).astype(jnp.bfloat16)
    bias = jnp.pad(b, (0, Cp - Cout)).astype(jnp.float32).reshape(1, Cp)

    M = B * Ho * Wo
    tm = _pick_tm(M)
    out = pl.pallas_call(
        _matmul_bias_relu_kernel,
        out_shape=jax.ShapeDtypeStruct((M, Cp), jnp.bfloat16),
        grid=(M // tm,),
        in_specs=[
            pl.BlockSpec((tm, Kp), lambda i: (i, 0)),
            pl.BlockSpec((Kp, Cp), lambda i: (0, 0)),    # constant block index -> DMA elided
            pl.BlockSpec((1, Cp), lambda i: (0, 0)),
        ],
        out_specs=pl.BlockSpec((tm, Cp), lambda i: (i, 0)),
        compiler_params=pltpu.CompilerParams(dimension_semantics=("parallel",)),
    )(patches, wm, bias)
    return out.reshape(B, Ho, Wo, Cp)


# ----------------------------------------------------------------------------
# Hoisted, image-invariant fused (ROIAlign bilinear + bin-average + AvgPool) matrix
# ----------------------------------------------------------------------------
def _build_pooled_bilinear_matrix(rois, Hf, Wf, scale, R, SR):
    """P of shape (n_rois, Hf*Wf): pooled[r] = P[r] @ feat_flat  ==  mean over the R*R*SR*SR
    bilinear samples of ROI r (Caffe2 RoIAlign, aligned=False, followed by AvgPool2d(R))."""
    n = rois.shape[0]
    PS = R * R * SR * SR
    s = jnp.arange(PS)
    ix = s % SR
    t = s // SR
    iy = t % SR
    t = t // SR
    pw = t % R
    ph = t // R

    x1 = rois[:, 0:1] * scale
    y1 = rois[:, 1:2] * scale
    x2 = rois[:, 2:3] * scale
    y2 = rois[:, 3:4] * scale
    bw = jnp.maximum(x2 - x1, 1.0) * (1.0 / R)
    bh = jnp.maximum(y2 - y1, 1.0) * (1.0 / R)

    yy = y1 + bh * (ph[None, :].astype(jnp.float32) + (iy[None, :].astype(jnp.float32) + 0.5) * (1.0 / SR))
    xx = x1 + bw * (pw[None, :].astype(jnp.float32) + (ix[None, :].astype(jnp.float32) + 0.5) * (1.0 / SR))

    valid = jnp.logical_not((yy < -1.0) | (yy > float(Hf)) | (xx < -1.0) | (xx > float(Wf)))
    yy = jnp.maximum(yy, 0.0)
    xx = jnp.maximum(xx, 0.0)
    yl0 = yy.astype(jnp.int32)
    xl0 = xx.astype(jnp.int32)
    cy = yl0 >= (Hf - 1)
    cx = xl0 >= (Wf - 1)
    y_lo = jnp.where(cy, Hf - 1, yl0)
    y_hi = jnp.where(cy, Hf - 1, yl0 + 1)
    x_lo = jnp.where(cx, Wf - 1, xl0)
    x_hi = jnp.where(cx, Wf - 1, xl0 + 1)
    ly = jnp.where(cy, float(Hf - 1), yy) - y_lo.astype(jnp.float32)
    lx = jnp.where(cx, float(Wf - 1), xx) - x_lo.astype(jnp.float32)
    hy = 1.0 - ly
    hx = 1.0 - lx
    v = valid.astype(jnp.float32) * (1.0 / PS)
    w1 = hy * hx * v
    w2 = hy * lx * v
    w3 = ly * hx * v
    w4 = ly * lx * v

    idx1 = y_lo * Wf + x_lo
    idx2 = y_lo * Wf + x_hi
    idx3 = y_hi * Wf + x_lo
    idx4 = y_hi * Wf + x_hi
    roi_idx = jnp.broadcast_to(jnp.arange(n)[:, None], (n, PS))

    P = jnp.zeros((n, Hf * Wf), jnp.float32)
    P = P.at[roi_idx, idx1].add(w1)
    P = P.at[roi_idx, idx2].add(w2)
    P = P.at[roi_idx, idx3].add(w3)
    P = P.at[roi_idx, idx4].add(w4)
    return P


# ----------------------------------------------------------------------------
# Fused ROIAlign + AvgPool + Linear + Softmax kernel (all ROIs of one image per step)
# ----------------------------------------------------------------------------
def _roi_head_kernel(p_ref, feat_ref, w_ref, b_ref, out_ref):
    # pooled features for all ROIs of this image: one MXU matmul against the (HWp, C) slab.
    pooled = jnp.dot(p_ref[...], feat_ref[0], preferred_element_type=jnp.float32)  # (n_rois, C)
    # Classifier padded to 128 lanes (padded classes have -1e9 bias -> probability exactly 0).
    logits = jnp.dot(pooled.astype(w_ref.dtype), w_ref[...],
                     preferred_element_type=jnp.float32) + b_ref[...]               # (n_rois, ncls_p)
    m = jnp.max(logits, axis=-1, keepdims=True)
    e = jnp.exp(logits - m)
    probs = e / jnp.sum(e, axis=-1, keepdims=True)       # exact division: rows sum to 1
    out_ref[...] = probs[None]                           # lane-dense (1, n_rois, 128) store


def roi_align_head(P, feat_cl, cls_w_pad, cls_b_pad):
    """P: (n_rois, HWp) bf16 fused pooling matrix.  feat_cl: (B, HWp, C) bf16 channels-last slab.
    Returns (B, n_rois, ncls_pad) f32 softmax probabilities."""
    B, HWp, C = feat_cl.shape
    n_rois = P.shape[0]
    ncls_p = cls_w_pad.shape[1]
    # TODO(synk): at production scale tile this over HW with an "arbitrary" grid axis and a VMEM
    # accumulator for `pooled` (v7x VMEM = 64 MiB); at toy scale the whole slab fits.
    return pl.pallas_call(
        _roi_head_kernel,
        out_shape=jax.ShapeDtypeStruct((B, n_rois, ncls_p), jnp.float32),
        grid=(B,),
        in_specs=[
            pl.BlockSpec((n_rois, HWp), lambda i: (0, 0)),   # fused pooling matrix (invariant)
            pl.BlockSpec((1, HWp, C), lambda i: (i, 0, 0)),  # this image's feature slab
            pl.BlockSpec((C, ncls_p), lambda i: (0, 0)),     # classifier weights (invariant)
            pl.BlockSpec((1, ncls_p), lambda i: (0, 0)),     # classifier bias   (invariant)
        ],
        out_specs=pl.BlockSpec((1, n_rois, ncls_p), lambda i: (i, 0, 0)),
        compiler_params=pltpu.CompilerParams(dimension_semantics=("parallel",)),
    )(P, feat_cl, cls_w_pad, cls_b_pad)


# ----------------------------------------------------------------------------
# Generalized_RCNN forward (inference / eval path)
# ----------------------------------------------------------------------------
def generalized_rcnn_forward(data, rois, params, *, resolution=4, sampling_ratio=2):
    num_images = data.shape[0]

    # Conv_Body (synthetic 2-layer ResNet-style stem), channels-last end to end, bf16 activations.
    x = jnp.transpose(data, (0, 2, 3, 1))                    # single NCHW -> NHWC relayout
    cmid = params["w1"].shape[0]
    cmid_p = _round_up(cmid, 128)
    # conv1's output channels are padded to 128 lanes; pad conv2's input channels to match
    # (padded channels are exactly zero after ReLU, so the math is unchanged).
    w2p = jnp.pad(params["w2"], ((0, 0), (0, cmid_p - cmid), (0, 0), (0, 0)))

    feat1 = conv2d_relu_nhwc(x, params["w1"], params["b1"], cout_pad=cmid_p)
    feat2 = conv2d_relu_nhwc(feat1, w2p, params["b2"])       # (B, Hf, Wf, Cfeat) bf16
    spatial_scale = 0.25                                     # two stride-2 convs

    B, Hf, Wf, Cfeat = feat2.shape
    blob_conv = jnp.transpose(feat2.astype(jnp.float32), (0, 3, 1, 2))   # NCHW f32 for return dict

    # Channels-last feature slab with the HW contraction dim padded to 128 lanes.
    HW = Hf * Wf
    HWp = _round_up(HW, 128)
    feat_cl = feat2.reshape(B, HW, Cfeat)
    if HWp != HW:
        feat_cl = jnp.pad(feat_cl, ((0, 0), (0, HWp - HW), (0, 0)))

    # rois_final = per-image cat([batch_ind, rois]): in the inference path every image gets the
    # same boxes, so the batch index is exactly the per-image grid axis of the ROI-head kernel,
    # and the fused (ROIAlign bilinear + bin-average + AvgPool) matrix is image-invariant and
    # built once here (hoisted out of the grid loop).
    P = _build_pooled_bilinear_matrix(rois.astype(jnp.float32), Hf, Wf, spatial_scale,
                                      resolution, sampling_ratio)        # (n_rois, HW) f32
    if HWp != HW:
        P = jnp.pad(P, ((0, 0), (0, HWp - HW)))
    P = P.astype(jnp.bfloat16)

    ncls = params["cls_w"].shape[1]
    ncls_p = _round_up(ncls, 128)
    cls_w = jnp.pad(params["cls_w"], ((0, 0), (0, ncls_p - ncls))).astype(jnp.bfloat16)
    cls_b = jnp.concatenate(
        [params["cls_b"].astype(jnp.float32),
         jnp.full((ncls_p - ncls,), -1e9, jnp.float32)]).reshape(1, ncls_p)

    probs = roi_align_head(P, feat_cl, cls_w, cls_b)         # (B, n_rois, ncls_p)
    cls_score = probs[:, :, :ncls].reshape(num_images, -1)

    # TODO(synk): training path (fast_rcnn_losses_no_regression, roidb deserialization) and the
    # FPN multi-level roi_feature_transform have no clean Pallas equivalent here; only the
    # inference return dict is produced.
    return {"blob_conv": blob_conv, "cls_score": cls_score}


# ----------------------------------------------------------------------------
# Pure-JAX references (for correctness checks only)
# ----------------------------------------------------------------------------
def _conv_ref(x, w, b):
    y = lax.conv_general_dilated(
        x.astype(jnp.bfloat16), w.astype(jnp.bfloat16), (2, 2), ((1, 1), (1, 1)),
        dimension_numbers=("NCHW", "OIHW", "NCHW"), preferred_element_type=jnp.float32)
    return jnp.maximum(y + b.reshape(1, -1, 1, 1), 0.0)


def _roi_head_ref(feat_nhwc, rois, cls_w, cls_b, *, R, SR, scale):
    B, Hf, Wf, C = feat_nhwc.shape
    PS = R * R * SR * SR
    s = jnp.arange(PS)
    ix = s % SR
    t = s // SR
    iy = t % SR
    t = t // SR
    pw = t % R
    ph = t // R
    x1 = rois[:, 0:1] * scale
    y1 = rois[:, 1:2] * scale
    x2 = rois[:, 2:3] * scale
    y2 = rois[:, 3:4] * scale
    bw = jnp.maximum(x2 - x1, 1.0) * (1.0 / R)
    bh = jnp.maximum(y2 - y1, 1.0) * (1.0 / R)
    yy = y1 + bh * (ph[None, :] + (iy[None, :] + 0.5) * (1.0 / SR))   # (n, PS)
    xx = x1 + bw * (pw[None, :] + (ix[None, :] + 0.5) * (1.0 / SR))
    valid = jnp.logical_not((yy < -1.0) | (yy > Hf) | (xx < -1.0) | (xx > Wf))
    yy = jnp.maximum(yy, 0.0)
    xx = jnp.maximum(xx, 0.0)
    yl0 = yy.astype(jnp.int32)
    xl0 = xx.astype(jnp.int32)
    cy = yl0 >= Hf - 1
    cx = xl0 >= Wf - 1
    y_lo = jnp.where(cy, Hf - 1, yl0)
    y_hi = jnp.where(cy, Hf - 1, yl0 + 1)
    x_lo = jnp.where(cx, Wf - 1, xl0)
    x_hi = jnp.where(cx, Wf - 1, xl0 + 1)
    ly = jnp.where(cy, float(Hf - 1), yy) - y_lo
    lx = jnp.where(cx, float(Wf - 1), xx) - x_lo
    hy = 1.0 - ly
    hx = 1.0 - lx
    outs = []
    for i in range(B):
        fm = feat_nhwc[i]                                    # (Hf, Wf, C)
        v1 = fm[y_lo, x_lo]
        v2 = fm[y_lo, x_hi]
        v3 = fm[y_hi, x_lo]
        v4 = fm[y_hi, x_hi]
        val = ((hy * hx)[..., None] * v1 + (hy * lx)[..., None] * v2
               + (ly * hx)[..., None] * v3 + (ly * lx)[..., None] * v4)
        val = val * valid[..., None].astype(val.dtype)
        pooled = val.mean(axis=1)                            # (n, C)
        logits = pooled @ cls_w + cls_b
        outs.append(jax.nn.softmax(logits, axis=-1))
    return jnp.concatenate(outs, axis=0)                     # (B*n, ncls)


if __name__ == "__main__":
    key = jax.random.PRNGKey(0)
    k1, k2, k3, k4, k5, k6 = jax.random.split(key, 6)

    # Small shapes: batch=2, channels=4, spatial=32 (so the /4 feature map is 8x8)
    B, Cin, H, W = 2, 4, 32, 32
    Cmid, Cfeat, ncls = 32, 128, 8
    R_boxes = 8
    resolution, sampling_ratio = 4, 2

    data = jax.random.normal(k1, (B, Cin, H, W), jnp.float32)
    xy1 = jax.random.uniform(k2, (R_boxes, 2), minval=0.0, maxval=16.0)
    wh = jax.random.uniform(k3, (R_boxes, 2), minval=4.0, maxval=15.0)
    rois = jnp.concatenate([xy1, jnp.minimum(xy1 + wh, 31.0)], axis=1)   # (R_boxes, 4) x1,y1,x2,y2

    params = {
        "w1": jax.random.normal(k4, (Cmid, Cin, 3, 3), jnp.float32) * 0.1,
        "b1": jnp.zeros((Cmid,), jnp.float32),
        "w2": jax.random.normal(k5, (Cfeat, Cmid, 3, 3), jnp.float32) * 0.05,
        "b2": jnp.zeros((Cfeat,), jnp.float32),
        "cls_w": jax.random.normal(k6, (Cfeat, ncls), jnp.float32) * 0.05,   # Box_Outs Linear
        "cls_b": jnp.zeros((ncls,), jnp.float32),
    }

    fwd = jax.jit(functools.partial(generalized_rcnn_forward,
                                    resolution=resolution, sampling_ratio=sampling_ratio))
    out = fwd(data, rois, params)
    blob_conv = jax.block_until_ready(out["blob_conv"])
    cls_score = jax.block_until_ready(out["cls_score"])

    # --- Sanity checks ---
    # 1) conv body vs lax reference (bf16 MXU inputs, f32 accumulate, bf16 activations both paths)
    ref_feat = _conv_ref(_conv_ref(data, params["w1"], params["b1"]), params["w2"], params["b2"])
    ref_feat = ref_feat.astype(jnp.bfloat16).astype(jnp.float32)
    assert blob_conv.shape == (B, Cfeat, 8, 8)
    assert jnp.allclose(ref_feat, blob_conv, atol=1e-2, rtol=1e-2)

    # 2) shapes + softmax rows sum to 1 (exact division) + finiteness
    assert cls_score.shape == (B, R_boxes * ncls)
    row_sums = cls_score.reshape(-1, ncls).sum(axis=-1)
    assert jnp.allclose(row_sums, jnp.ones_like(row_sums), atol=1e-3)
    assert bool(jnp.isfinite(cls_score).all())

    # 3) fused ROIAlign + AvgPool + Linear + Softmax vs a pure-JAX f32 reference
    feat_ref_nhwc = jnp.transpose(blob_conv, (0, 2, 3, 1))
    probs_ref = _roi_head_ref(feat_ref_nhwc, rois, params["cls_w"], params["cls_b"],
                              R=resolution, SR=sampling_ratio, scale=0.25)
    assert jnp.allclose(cls_score.reshape(-1, ncls), probs_ref, atol=2e-2)

    print("KERNEL_OK")
</pallas_src>

<mosaic_0001>
module attributes {stable_mosaic.version = 11 : i64} {
  func.func private @main(%arg0: i32) attributes {dimension_semantics = [#tpu.dimension_semantics<core_parallel>], iteration_bounds = array<i64: 2>, tpu.core_type = #tpu.core_type<sc_scalar_subcore>, window_params = []} {
    return
  }
}

module attributes {stable_mosaic.version = 11 : i64} {
  func.func private @main(%arg0: i32) attributes {dimension_semantics = [#tpu.dimension_semantics<core_parallel>], iteration_bounds = array<i64: 2>, tpu.core_type = #tpu.core_type<sc_scalar_subcore>, window_params = []} {
    return
  }
}

module attributes {stable_mosaic.version = 11 : i64} {
  func.func @_matmul_bias_relu_kernel(%arg0: i32, %arg1: memref<256x128xbf16, #tpu.memory_space<vmem>>, %arg2: memref<128x128xbf16, #tpu.memory_space<vmem>>, %arg3: memref<1x128xf32, #tpu.memory_space<vmem>>, %arg4: memref<256x128xbf16, #tpu.memory_space<vmem>>) attributes {dimension_semantics = [#tpu.dimension_semantics<parallel>], iteration_bounds = array<i64: 2>, scalar_prefetch = 0 : i64, scratch_operands = 0 : i64, tpu.core_type = #tpu.core_type<tc>, window_params = [{transform_indices = @transform_0, window_bounds = array<i64: 256, 128>}, {pipeline_mode = #tpu.pipeline_mode<synchronous>, transform_indices = @transform_1, window_bounds = array<i64: 128, 128>}, {pipeline_mode = #tpu.pipeline_mode<synchronous>, transform_indices = @transform_2, window_bounds = array<i64: 1, 128>}, {transform_indices = @transform_3, window_bounds = array<i64: 256, 128>}]} {
    %c0 = arith.constant 0 : index
    %c0_0 = arith.constant 0 : index
    %0 = vector.load %arg1[%c0, %c0_0] : memref<256x128xbf16, #tpu.memory_space<vmem>>, vector<256x128xbf16>
    %c0_1 = arith.constant 0 : index
    %c0_2 = arith.constant 0 : index
    %1 = vector.load %arg2[%c0_1, %c0_2] : memref<128x128xbf16, #tpu.memory_space<vmem>>, vector<128x128xbf16>
    %cst = arith.constant dense<0.000000e+00> : vector<256x128xf32>
    %2 = tpu.matmul %0, %1, %cst {dimension_numbers = #tpu.dot_dimension_numbers<[1], [0], [0], [1], [0, 0, 1, 1], [], []>} : vector<256x128xbf16>, vector<128x128xbf16>, vector<256x128xf32> -> vector<256x128xf32>
    %c0_3 = arith.constant 0 : index
    %c0_4 = arith.constant 0 : index
    %3 = vector.load %arg3[%c0_3, %c0_4] : memref<1x128xf32, #tpu.memory_space<vmem>>, vector<1x128xf32>
    %4 = vector.broadcast %3 : vector<1x128xf32> to vector<256x128xf32>
    %5 = arith.addf %2, %4 : vector<256x128xf32>
    %cst_5 = arith.constant 0.000000e+00 : f32
    %6 = vector.broadcast %cst_5 : f32 to vector<256x128xf32>
    %7 = arith.maximumf %5, %6 : vector<256x128xf32>
    %8 = arith.truncf %7 : vector<256x128xf32> to vector<256x128xbf16>
    %c0_6 = arith.constant 0 : index
    %c0_7 = arith.constant 0 : index
    %9 = vector.load %arg4[%c0_6, %c0_7] : memref<256x128xbf16, #tpu.memory_space<vmem>>, vector<256x128xbf16>
    tpu.vector_store %arg4[%c0_6, %c0_7], %8 {strides = array<i32>} : memref<256x128xbf16, #tpu.memory_space<vmem>>, vector<256x128xbf16>,
    return
  }
  func.func @transform_0(%arg0: i32) -> (i32, i32) {
    %c0_i32 = arith.constant 0 : i32
    %c0_i32_0 = arith.constant 0 : i32
    return %arg0, %c0_i32 : i32, i32
  }
  func.func @transform_1(%arg0: i32) -> (i32, i32) {
    %c0_i32 = arith.constant 0 : i32
    %c0_i32_0 = arith.constant 0 : i32
    %c0_i32_1 = arith.constant 0 : i32
    return %c0_i32, %c0_i32_0 : i32, i32
  }
  func.func @transform_2(%arg0: i32) -> (i32, i32) {
    %c0_i32 = arith.constant 0 : i32
    %c0_i32_0 = arith.constant 0 : i32
    %c0_i32_1 = arith.constant 0 : i32
    return %c0_i32, %c0_i32_0 : i32, i32
  }
  func.func @transform_3(%arg0: i32) -> (i32, i32) {
    %c0_i32 = arith.constant 0 : i32
    %c0_i32_0 = arith.constant 0 : i32
    return %arg0, %c0_i32 : i32, i32
  }
}

module attributes {stable_mosaic.version = 11 : i64} {
  func.func @_matmul_bias_relu_kernel(%arg0: i32, %arg1: memref<128x1152xbf16, #tpu.memory_space<vmem>>, %arg2: memref<1152x128xbf16, #tpu.memory_space<vmem>>, %arg3: memref<1x128xf32, #tpu.memory_space<vmem>>, %arg4: memref<128x128xbf16, #tpu.memory_space<vmem>>) attributes {dimension_semantics = [#tpu.dimension_semantics<parallel>], iteration_bounds = array<i64: 1>, scalar_prefetch = 0 : i64, scratch_operands = 0 : i64, tpu.core_type = #tpu.core_type<tc>, window_params = [{transform_indices = @transform_0, window_bounds = array<i64: 128, 1152>}, {pipeline_mode = #tpu.pipeline_mode<synchronous>, transform_indices = @transform_1, window_bounds = array<i64: 1152, 128>}, {pipeline_mode = #tpu.pipeline_mode<synchronous>, transform_indices = @transform_2, window_bounds = array<i64: 1, 128>}, {transform_indices = @transform_3, window_bounds = array<i64: 128, 128>}]} {
    %c0 = arith.constant 0 : index
    %c0_0 = arith.constant 0 : index
    %0 = vector.load %arg1[%c0, %c0_0] : memref<128x1152xbf16, #tpu.memory_space<vmem>>, vector<128x1152xbf16>
    %c0_1 = arith.constant 0 : index
    %c0_2 = arith.constant 0 : index
    %1 = vector.load %arg2[%c0_1, %c0_2] : memref<1152x128xbf16, #tpu.memory_space<vmem>>, vector<1152x128xbf16>
    %cst = arith.constant dense<0.000000e+00> : vector<128x128xf32>
    %2 = tpu.matmul %0, %1, %cst {dimension_numbers = #tpu.dot_dimension_numbers<[1], [0], [0], [1], [0, 0, 1, 1], [], []>} : vector<128x1152xbf16>, vector<1152x128xbf16>, vector<128x128xf32> -> vector<128x128xf32>
    %c0_3 = arith.constant 0 : index
    %c0_4 = arith.constant 0 : index
    %3 = vector.load %arg3[%c0_3, %c0_4] : memref<1x128xf32, #tpu.memory_space<vmem>>, vector<1x128xf32>
    %4 = vector.broadcast %3 : vector<1x128xf32> to vector<128x128xf32>
    %5 = arith.addf %2, %4 : vector<128x128xf32>
    %cst_5 = arith.constant 0.000000e+00 : f32
    %6 = vector.broadcast %cst_5 : f32 to vector<128x128xf32>
    %7 = arith.maximumf %5, %6 : vector<128x128xf32>
    %8 = arith.truncf %7 : vector<128x128xf32> to vector<128x128xbf16>
    %c0_6 = arith.constant 0 : index
    %c0_7 = arith.constant 0 : index
    %9 = vector.load %arg4[%c0_6, %c0_7] : memref<128x128xbf16, #tpu.memory_space<vmem>>, vector<128x128xbf16>
    tpu.vector_store %arg4[%c0_6, %c0_7], %8 {strides = array<i32>} : memref<128x128xbf16, #tpu.memory_space<vmem>>, vector<128x128xbf16>,
    return
  }
  func.func @transform_0(%arg0: i32) -> (i32, i32) {
    %c0_i32 = arith.constant 0 : i32
    %c0_i32_0 = arith.constant 0 : i32
    return %arg0, %c0_i32 : i32, i32
  }
  func.func @transform_1(%arg0: i32) -> (i32, i32) {
    %c0_i32 = arith.constant 0 : i32
    %c0_i32_0 = arith.constant 0 : i32
    %c0_i32_1 = arith.constant 0 : i32
    return %c0_i32, %c0_i32_0 : i32, i32
  }
  func.func @transform_2(%arg0: i32) -> (i32, i32) {
    %c0_i32 = arith.constant 0 : i32
    %c0_i32_0 = arith.constant 0 : i32
    %c0_i32_1 = arith.constant 0 : i32
    return %c0_i32, %c0_i32_0 : i32, i32
  }
  func.func @transform_3(%arg0: i32) -> (i32, i32) {
    %c0_i32 = arith.constant 0 : i32
    %c0_i32_0 = arith.constant 0 : i32
    return %arg0, %c0_i32 : i32, i32
  }
}

module attributes {stable_mosaic.version = 11 : i64} {
  func.func @_roi_head_kernel(%arg0: i32, %arg1: memref<8x128xbf16, #tpu.memory_space<vmem>>, %arg2: memref<1x128x128xbf16, #tpu.memory_space<vmem>>, %arg3: memref<128x128xbf16, #tpu.memory_space<vmem>>, %arg4: memref<1x128xf32, #tpu.memory_space<vmem>>, %arg5: memref<1x8x128xf32, #tpu.memory_space<vmem>>) attributes {dimension_semantics = [#tpu.dimension_semantics<parallel>], iteration_bounds = array<i64: 2>, scalar_prefetch = 0 : i64, scratch_operands = 0 : i64, tpu.core_type = #tpu.core_type<tc>, window_params = [{pipeline_mode = #tpu.pipeline_mode<synchronous>, transform_indices = @transform_0, window_bounds = array<i64: 8, 128>}, {transform_indices = @transform_1, window_bounds = array<i64: 1, 128, 128>}, {pipeline_mode = #tpu.pipeline_mode<synchronous>, transform_indices = @transform_2, window_bounds = array<i64: 128, 128>}, {pipeline_mode = #tpu.pipeline_mode<synchronous>, transform_indices = @transform_3, window_bounds = array<i64: 1, 128>}, {transform_indices = @transform_4, window_bounds = array<i64: 1, 8, 128>}]} {
    %c0 = arith.constant 0 : index
    %c0_0 = arith.constant 0 : index
    %0 = vector.load %arg1[%c0, %c0_0] : memref<8x128xbf16, #tpu.memory_space<vmem>>, vector<8x128xbf16>
    %c0_1 = arith.constant 0 : index
    %c0_2 = arith.constant 0 : index
    %c0_3 = arith.constant 0 : index
    %1 = vector.load %arg2[%c0_1, %c0_2, %c0_3] : memref<1x128x128xbf16, #tpu.memory_space<vmem>>, vector<1x128x128xbf16>
    %2 = vector.shape_cast %1 : vector<1x128x128xbf16> to vector<128x128xbf16>
    %cst = arith.constant dense<0.000000e+00> : vector<8x128xf32>
    %3 = tpu.matmul %0, %2, %cst {dimension_numbers = #tpu.dot_dimension_numbers<[1], [0], [0], [1], [0, 0, 1, 1], [], []>} : vector<8x128xbf16>, vector<128x128xbf16>, vector<8x128xf32> -> vector<8x128xf32>
    %4 = arith.truncf %3 : vector<8x128xf32> to vector<8x128xbf16>
    %c0_4 = arith.constant 0 : index
    %c0_5 = arith.constant 0 : index
    %5 = vector.load %arg3[%c0_4, %c0_5] : memref<128x128xbf16, #tpu.memory_space<vmem>>, vector<128x128xbf16>
    %cst_6 = arith.constant dense<0.000000e+00> : vector<8x128xf32>
    %6 = tpu.matmul %4, %5, %cst_6 {dimension_numbers = #tpu.dot_dimension_numbers<[1], [0], [0], [1], [0, 0, 1, 1], [], []>} : vector<8x128xbf16>, vector<128x128xbf16>, vector<8x128xf32> -> vector<8x128xf32>
    %c0_7 = arith.constant 0 : index
    %c0_8 = arith.constant 0 : index
    %7 = vector.load %arg4[%c0_7, %c0_8] : memref<1x128xf32, #tpu.memory_space<vmem>>, vector<1x128xf32>
    %8 = vector.broadcast %7 : vector<1x128xf32> to vector<8x128xf32>
    %9 = arith.addf %6, %8 : vector<8x128xf32>
    %cst_9 = arith.constant dense<0xFF800000> : vector<8xf32>
    %10 = vector.multi_reduction <maximumf>, %9, %cst_9 [1] : vector<8x128xf32> to vector<8xf32>
    %11 = vector.shape_cast %10 : vector<8xf32> to vector<8x1xf32>
    %12 = vector.broadcast %11 : vector<8x1xf32> to vector<8x128xf32>
    %13 = arith.subf %9, %12 : vector<8x128xf32>
    %14 = math.exp %13 : vector<8x128xf32>
    %cst_10 = arith.constant dense<0.000000e+00> : vector<8xf32>
    %15 = vector.multi_reduction <add>, %14, %cst_10 [1] : vector<8x128xf32> to vector<8xf32>
    %16 = vector.shape_cast %15 : vector<8xf32> to vector<8x1xf32>
    %17 = vector.broadcast %16 : vector<8x1xf32> to vector<8x128xf32>
    %18 = arith.divf %14, %17 : vector<8x128xf32>
    %19 = vector.shape_cast %18 : vector<8x128xf32> to vector<1x8x128xf32>
    %c0_11 = arith.constant 0 : index
    %c0_12 = arith.constant 0 : index
    %c0_13 = arith.constant 0 : index
    %20 = vector.load %arg5[%c0_11, %c0_12, %c0_13] : memref<1x8x128xf32, #tpu.memory_space<vmem>>, vector<1x8x128xf32>
    tpu.vector_store %arg5[%c0_11, %c0_12, %c0_13], %19 {strides = array<i32>} : memref<1x8x128xf32, #tpu.memory_space<vmem>>, vector<1x8x128xf32>,
    return
  }
  func.func @transform_0(%arg0: i32) -> (i32, i32) {
    %c0_i32 = arith.constant 0 : i32
    %c0_i32_0 = arith.constant 0 : i32
    %c0_i32_1 = arith.constant 0 : i32
    return %c0_i32, %c0_i32_0 : i32, i32
  }
  func.func @transform_1(%arg0: i32) -> (i32, i32, i32) {
    %c0_i32 = arith.constant 0 : i32
    %c0_i32_0 = arith.constant 0 : i32
    %c0_i32_1 = arith.constant 0 : i32
    return %arg0, %c0_i32, %c0_i32_0 : i32, i32, i32
  }
  func.func @transform_2(%arg0: i32) -> (i32, i32) {
    %c0_i32 = arith.constant 0 : i32
    %c0_i32_0 = arith.constant 0 : i32
    %c0_i32_1 = arith.constant 0 : i32
    return %c0_i32, %c0_i32_0 : i32, i32
  }
  func.func @transform_3(%arg0: i32) -> (i32, i32) {
    %c0_i32 = arith.constant 0 : i32
    %c0_i32_0 = arith.constant 0 : i32
    %c0_i32_1 = arith.constant 0 : i32
    return %c0_i32, %c0_i32_0 : i32, i32
  }
  func.func @transform_4(%arg0: i32) -> (i32, i32, i32) {
    %c0_i32 = arith.constant 0 : i32
    %c0_i32_0 = arith.constant 0 : i32
    %c0_i32_1 = arith.constant 0 : i32
    return %arg0, %c0_i32, %c0_i32_0 : i32, i32, i32
  }
}

</mosaic_0001>

<llo_original>
// kernel: generalized_rcnn_forward.3
$region0: #{generalized_rcnn_forward.3}
  #allocation0 [shape = 'u32[]', space=smem, size = 0x4, offset = 0x4, fixed_abs, tag = 'smem constant byte address 0x4 - core index']
  #allocation1 [shape = 'u32[144,128]{1,0:T(1,128)}', space=vmem, size = 0x12000, scoped, tag = 'internal scratch']
  %s0 = inlined_call_operand.vmem [shape: bf16[512,128], index: 0, kind: input, shape index: {}]
  %s1 = inlined_call_operand.vmem [shape: bf16[128,128], index: 1, kind: input, shape index: {}]
  %s2 = inlined_call_operand.vmem [shape: f32[1,128], index: 2, kind: input, shape index: {}]
  %s3 = inlined_call_operand.vmem [shape: bf16[512,128], index: 3, kind: output, shape index: {}]
  %s4 = sld [smem:[#allocation0]]
  $region45: #{generalized_rcnn_forward.3} parent=0
    _
  %s6 = ssub.s32 1, %s4
  %s7 = scalar_select 0, %s6, %s4
  loop: start=0, step=1, limit=4
  $region2: #{generalized_rcnn_forward.3} parent=0 // loop_pre_header
    _
  $region3: #{generalized_rcnn_forward.3} parent=0 // loop_header
    %s9 = sphi 0, %s13
    %p10 = scmp.ge.s32.totalorder %s9, 4
    %s19 = sphi 0, %s21
    %s22 = sphi 0, %s19
    %s23 = sphi 0, %s22
    %s39 = sphi 0, %s23
    %s43 = sphi 0, %s43
    %s45 = sphi 0, %s43
    %s46 = sphi 0, %s45
    %s60 = sphi 0, %s46
    %s64 = sphi 0, %s64
    %s66 = sphi 0, %s64
    %s67 = sphi 0, %s66
    %s81 = sphi 0, %s67
    %s87 = sphi 0, %s89
    %s90 = sphi 0, %s87
    %s91 = sphi 0, %s90
    %s107 = sphi 0, %s91
  $region4: #{generalized_rcnn_forward.3} parent=0 // loop_header_branch
    %12 = sbr.rel (%p10) target = $region8
  $region5: #{generalized_rcnn_forward.3} parent=0 // loop_body
    %s14 = ssub.s32 %s9, 1
    %s15 = ssub.s32 %s9, 2
    %s16 = sadd.s32 %s9, 1
    %s17 = ssub.s32 %s9, %s16
    %p18 = scmp.eq.s32.totalorder %s17, 0
    %s20 = sadd.s32 %s19, 1
    %s21 = scalar_select %p18, %s19, %s20
    %p24 = pneg %p18
    %p25 = scmp.eq.s32.totalorder %s9, 1
    %p26 = por %p24, %p25
    %p27 = scmp.ne.s32.totalorder %s19, %s22
    %p28 = scmp.eq.s32.totalorder %s9, 0
    %p29 = por %p27, %p28
    %p30 = scmp.ne.s32.totalorder %s19, %s22
    %p31 = scmp.eq.s32.totalorder %s14, 1
    %p32 = por %p30, %p31
    %p33 = scmp.ne.s32.totalorder %s22, %s23
    %p34 = scmp.eq.s32.totalorder %s14, 0
    %p35 = por %p33, %p34
    %p36 = scmp.ne.s32.totalorder %s22, %s23
    %p37 = scmp.eq.s32.totalorder %s15, 1
    %p38 = por %p36, %p37
    %p40 = scmp.ne.s32.totalorder %s23, %s39
    %p41 = scmp.eq.s32.totalorder %s15, 0
    %p42 = por %p40, %p41
    %s44 = sadd.s32 %s43, 1
    %p47 = scmp.eq.s32.totalorder %s9, 1
    %p48 = scmp.ne.s32.totalorder %s43, %s45
    %p49 = scmp.eq.s32.totalorder %s9, 0
    %p50 = por %p48, %p49
    %p51 = scmp.ne.s32.totalorder %s43, %s45
    %p52 = scmp.eq.s32.totalorder %s14, 1
    %p53 = por %p51, %p52
    %p54 = scmp.ne.s32.totalorder %s45, %s46
    %p55 = scmp.eq.s32.totalorder %s14, 0
    %p56 = por %p54, %p55
    %p57 = scmp.ne.s32.totalorder %s45, %s46
    %p58 = scmp.eq.s32.totalorder %s15, 1
    %p59 = por %p57, %p58
    %p61 = scmp.ne.s32.totalorder %s46, %s60
    %p62 = scmp.eq.s32.totalorder %s15, 0
    %p63 = por %p61, %p62
    %s65 = sadd.s32 %s64, 1
    %p68 = scmp.eq.s32.totalorder %s9, 1
    %p69 = scmp.ne.s32.totalorder %s64, %s66
    %p70 = scmp.eq.s32.totalorder %s9, 0
    %p71 = por %p69, %p70
    %p72 = scmp.ne.s32.totalorder %s64, %s66
    %p73 = scmp.eq.s32.totalorder %s14, 1
    %p74 = por %p72, %p73
    %p75 = scmp.ne.s32.totalorder %s66, %s67
    %p76 = scmp.eq.s32.totalorder %s14, 0
    %p77 = por %p75, %p76
    %p78 = scmp.ne.s32.totalorder %s66, %s67
    %p79 = scmp.eq.s32.totalorder %s15, 1
    %p80 = por %p78, %p79
    %p82 = scmp.ne.s32.totalorder %s67, %s81
    %p83 = scmp.eq.s32.totalorder %s15, 0
    %p84 = por %p82, %p83
    %s85 = ssub.s32 %s9, %s16
    %p86 = scmp.eq.s32.totalorder %s85, 0
    %s88 = sadd.s32 %s87, 1
    %s89 = scalar_select %p86, %s87, %s88
    %p92 = pneg %p86
    %p93 = scmp.eq.s32.totalorder %s9, 1
    %p94 = por %p92, %p93
    %p95 = scmp.ne.s32.totalorder %s87, %s90
    %p96 = scmp.eq.s32.totalorder %s9, 0
    %p97 = por %p95, %p96
    %p98 = scmp.ne.s32.totalorder %s87, %s90
    %p99 = scmp.eq.s32.totalorder %s14, 1
    %p100 = por %p98, %p99
    %p101 = scmp.ne.s32.totalorder %s90, %s91
    %p102 = scmp.eq.s32.totalorder %s14, 0
    %p103 = por %p101, %p102
    %p104 = scmp.ne.s32.totalorder %s90, %s91
    %p105 = scmp.eq.s32.totalorder %s15, 1
    %p106 = por %p104, %p105
    %p108 = scmp.ne.s32.totalorder %s91, %s107
    %p109 = scmp.eq.s32.totalorder %s15, 0
    %p110 = por %p108, %p109
    %p111 = scmp.le.s32.totalorder 1, %s9
    %p112 = scmp.lt.s32.totalorder %s9, 3
    %p113 = pnand %p111, %p112
    %p114 = pneg %p113
    // Predicated region
    $region9: #{generalized_rcnn_forward.3} parent=5 // pred_check
      _
    $region10: #{generalized_rcnn_forward.3} parent=5 // pred_check_branch
      %116 = sbr.rel (%p113) target = $region12
    $region11: #{generalized_rcnn_forward.3} parent=5 // pred_region
      %s117 = ssub.s32 %s9, 1
      // Predicated region
      $region13: #{generalized_rcnn_forward.3} parent=11 // pred_check
        %p118 = pneg %p56
      $region14: #{generalized_rcnn_forward.3} parent=11 // pred_check_branch
        %120 = sbr.rel (%p118) target = $region16
      $region15: #{generalized_rcnn_forward.3} parent=11 // pred_region
        _
      $region16: #{generalized_rcnn_forward.3} parent=11 // pred_fallthru
        _
      // Predicated region
      $region17: #{generalized_rcnn_forward.3} parent=11 // pred_check
        %p121 = pneg %p77
      $region18: #{generalized_rcnn_forward.3} parent=11 // pred_check_branch
        %123 = sbr.rel (%p121) target = $region20
      $region19: #{generalized_rcnn_forward.3} parent=11 // pred_region
        _
      $region20: #{generalized_rcnn_forward.3} parent=11 // pred_fallthru
        _
    $region12: #{generalized_rcnn_forward.3} parent=5 // pred_fallthru
      _
    %p124 = scmp.lt.s32.totalorder %s9, 2
    // Predicated region
    $region21: #{generalized_rcnn_forward.3} parent=5 // pred_check
      %p125 = pneg %p124
    $region22: #{generalized_rcnn_forward.3} parent=5 // pred_check_branch
      %127 = sbr.rel (%p125) target = $region24
    $region23: #{generalized_rcnn_forward.3} parent=5 // pred_region
      // Predicated region
      $region25: #{generalized_rcnn_forward.3} parent=23 // pred_check
        %p128 = pneg %p29
      $region26: #{generalized_rcnn_forward.3} parent=23 // pred_check_branch
        %130 = sbr.rel (%p128) target = $region28
      $region27: #{generalized_rcnn_forward.3} parent=23 // pred_region
        %s131 = smul.u32 32, %s9
        %p132 = scmp.lt.s32.totalorder %s131, 63
        %s133 = scalar_select %p132, %s131, 63
        %s134 = smul.addr %s133, 4
        %s135 = scalar_lea.vmem %s0, %s134
        %s136 = smul.u32 32, %s9
      $region28: #{generalized_rcnn_forward.3} parent=23 // pred_fallthru
        _
    $region24: #{generalized_rcnn_forward.3} parent=5 // pred_fallthru
      _
    %p137 = scmp.le.s32.totalorder 1, %s9
    %p138 = scmp.lt.s32.totalorder %s9, 3
    %p139 = pnand %p137, %p138
    %p140 = pneg %p139
    // Predicated region
    $region29: #{generalized_rcnn_forward.3} parent=5 // pred_check
      _
    $region30: #{generalized_rcnn_forward.3} parent=5 // pred_check_branch
      %142 = sbr.rel (%p139) target = $region32
    $region31: #{generalized_rcnn_forward.3} parent=5 // pred_region
      %s143 = ssub.s32 %s9, 1
      %s144 = smul.u32 32, %s14
      %p145 = scmp.lt.s32.totalorder %s144, 63
      %s146 = scalar_select %p145, %s144, 63
      %s147 = smul.addr %s146, 4
      %s148 = scalar_lea.vmem %s0, %s147
      %p149 = pneg %p35
      %p150 = pneg %p32
      %p151 = pneg %p56
      %p152 = pneg %p53
      %p153 = pneg %p77
      %p154 = pneg %p74
      %p155 = pneg %p103
      %p156 = pneg %p100
      %s157 = smul.u32 32, %s14
      %p158 = scmp.lt.s32.totalorder %s157, 63
      %s159 = scalar_select %p158, %s157, 63
      %s160 = smul.addr %s159, 4
      %s161 = scalar_lea.vmem %s3, %s160
      %s162 = smul.u32 32, %s14
      %p163 = scmp.lt.s32.totalorder %s162, 63
      %s164 = scalar_select %p163, %s162, 63
      %s165 = smul.addr %s164, 4
      %s166 = scalar_lea.vmem %s0, %s165
      %s167 = smul.u32 32, %s14
      %s168 = smul.u32 32, %s14
      %p169 = scmp.lt.s32.totalorder %s168, 63
      %s170 = scalar_select %p169, %s168, 63
      %s171 = smul.addr %s170, 4
      %s172 = scalar_lea.vmem %s3, %s171
      %s173 = smul.u32 32, %s14
      %v175 = vld [vmem:[%s166] sm:$0xf]
      %v176 = vld [vmem:[%s166 + $0x4] sm:$0xf]
      %v177 = vld [vmem:[%s166 + $0x8] sm:$0xf]
      %v178 = vld [vmem:[%s166 + $0xc] sm:$0xf]
      %v179 = vld [vmem:[%s166 + $0x10] sm:$0xf]
      %v180 = vld [vmem:[%s166 + $0x14] sm:$0xf]
      %v181 = vld [vmem:[%s166 + $0x18] sm:$0xf]
      %v182 = vld [vmem:[%s166 + $0x1c] sm:$0xf]
      %v183 = vld [vmem:[%s166 + $0x20] sm:$0xf]
      %v184 = vld [vmem:[%s166 + $0x24] sm:$0xf]
      %v185 = vld [vmem:[%s166 + $0x28] sm:$0xf]
      %v186 = vld [vmem:[%s166 + $0x2c] sm:$0xf]
      %v187 = vld [vmem:[%s166 + $0x30] sm:$0xf]
      %v188 = vld [vmem:[%s166 + $0x34] sm:$0xf]
      %v189 = vld [vmem:[%s166 + $0x38] sm:$0xf]
      %v190 = vld [vmem:[%s166 + $0x3c] sm:$0xf]
      %v191 = vld [vmem:[%s166 + $0x40] sm:$0xf]
      %v192 = vld [vmem:[%s166 + $0x44] sm:$0xf]
      %v193 = vld [vmem:[%s166 + $0x48] sm:$0xf]
      %v194 = vld [vmem:[%s166 + $0x4c] sm:$0xf]
      %v195 = vld [vmem:[%s166 + $0x50] sm:$0xf]
      %v196 = vld [vmem:[%s166 + $0x54] sm:$0xf]
      %v197 = vld [vmem:[%s166 + $0x58] sm:$0xf]
      %v198 = vld [vmem:[%s166 + $0x5c] sm:$0xf]
      %v199 = vld [vmem:[%s166 + $0x60] sm:$0xf]
      %v200 = vld [vmem:[%s166 + $0x64] sm:$0xf]
      %v201 = vld [vmem:[%s166 + $0x68] sm:$0xf]
      %v202 = vld [vmem:[%s166 + $0x6c] sm:$0xf]
      %v203 = vld [vmem:[%s166 + $0x70] sm:$0xf]
      %v204 = vld [vmem:[%s166 + $0x74] sm:$0xf]
      %v205 = vld [vmem:[%s166 + $0x78] sm:$0xf]
      %v206 = vld [vmem:[%s166 + $0x7c] sm:$0xf]
      %v207 = vld [vmem:[%s1] sm:$0xf]
      %v208 = vld [vmem:[%s1 + $0x4] sm:$0xf]
      %v209 = vld [vmem:[%s1 + $0x8] sm:$0xf]
      %v210 = vld [vmem:[%s1 + $0xc] sm:$0xf]
      %v211 = vld [vmem:[%s1 + $0x10] sm:$0xf]
      %v212 = vld [vmem:[%s1 + $0x14] sm:$0xf]
      %v213 = vld [vmem:[%s1 + $0x18] sm:$0xf]
      %v214 = vld [vmem:[%s1 + $0x1c] sm:$0xf]
      %v215 = vld [vmem:[%s1 + $0x20] sm:$0xf]
      %v216 = vld [vmem:[%s1 + $0x24] sm:$0xf]
      %v217 = vld [vmem:[%s1 + $0x28] sm:$0xf]
      %v218 = vld [vmem:[%s1 + $0x2c] sm:$0xf]
      %v219 = vld [vmem:[%s1 + $0x30] sm:$0xf]
      %v220 = vld [vmem:[%s1 + $0x34] sm:$0xf]
      %v221 = vld [vmem:[%s1 + $0x38] sm:$0xf]
      %v222 = vld [vmem:[%s1 + $0x3c] sm:$0xf]
      %v223 = vld [vmem:[%s2] sm:$0x1]
      %v225 = vlaneseq
      %v226 = vshrl.u32 %v225, 7
      %v227 = vsub.s32 0, %v226
      %v228 = vrot.slane %v223, %v227
      %v262 = vunpack.c.l.b16 %v175
      %v263 = vunpack.c.l.b16 %v176
      %v264 = vunpack.c.l.b16 %v177
      %v265 = vunpack.c.l.b16 %v178
      %v266 = vunpack.c.l.b16 %v179
      %v267 = vunpack.c.l.b16 %v180
      %v268 = vunpack.c.l.b16 %v181
      %v269 = vunpack.c.l.b16 %v182
      %v270 = vunpack.c.l.b16 %v183
      %v271 = vunpack.c.l.b16 %v184
      %v272 = vunpack.c.l.b16 %v185
      %v273 = vunpack.c.l.b16 %v186
      %v274 = vunpack.c.l.b16 %v187
      %v275 = vunpack.c.l.b16 %v188
      %v276 = vunpack.c.l.b16 %v189
      %v277 = vunpack.c.l.b16 %v190
      %v278 = vunpack.c.l.b16 %v191
      %v279 = vunpack.c.l.b16 %v192
      %v280 = vunpack.c.l.b16 %v193
      %v281 = vunpack.c.l.b16 %v194
      %v282 = vunpack.c.l.b16 %v195
      %v283 = vunpack.c.l.b16 %v196
      %v284 = vunpack.c.l.b16 %v197
      %v285 = vunpack.c.l.b16 %v198
      %v286 = vunpack.c.l.b16 %v199
      %v287 = vunpack.c.l.b16 %v200
      %v288 = vunpack.c.l.b16 %v201
      %v289 = vunpack.c.l.b16 %v202
      %v290 = vunpack.c.l.b16 %v203
      %v291 = vunpack.c.l.b16 %v204
      %v292 = vunpack.c.l.b16 %v205
      %v293 = vunpack.c.l.b16 %v206
      %v294 = vpack.c.b16 %v263, %v262
      %v295 = vpack.c.b16 %v265, %v264
      %v296 = vpack.c.b16 %v267, %v266
      %v297 = vpack.c.b16 %v269, %v268
      %v298 = vpack.c.b16 %v271, %v270
      %v299 = vpack.c.b16 %v273, %v272
      %v300 = vpack.c.b16 %v275, %v274
      %v301 = vpack.c.b16 %v277, %v276
      %v302 = vpack.c.b16 %v279, %v278
      %v303 = vpack.c.b16 %v281, %v280
      %v304 = vpack.c.b16 %v283, %v282
      %v305 = vpack.c.b16 %v285, %v284
      %v306 = vpack.c.b16 %v287, %v286
      %v307 = vpack.c.b16 %v289, %v288
      %v308 = vpack.c.b16 %v291, %v290
      %v309 = vpack.c.b16 %v293, %v292
      %v342 = vunpack.c.l.b16 %v207
      %v343 = vunpack.c.l.b16 %v208
      %v344 = vunpack.c.l.b16 %v209
      %v345 = vunpack.c.l.b16 %v210
      %v346 = vunpack.c.l.b16 %v211
      %v347 = vunpack.c.l.b16 %v212
      %v348 = vunpack.c.l.b16 %v213
      %v349 = vunpack.c.l.b16 %v214
      %v350 = vunpack.c.l.b16 %v215
      %v351 = vunpack.c.l.b16 %v216
      %v352 = vunpack.c.l.b16 %v217
      %v353 = vunpack.c.l.b16 %v218
      %v354 = vunpack.c.l.b16 %v219
      %v355 = vunpack.c.l.b16 %v220
      %v356 = vunpack.c.l.b16 %v221
      %v357 = vunpack.c.l.b16 %v222
      %v358 = vpack.c.b16 %v343, %v342
      %v359 = vpack.c.b16 %v345, %v344
      %v360 = vpack.c.b16 %v347, %v346
      %v361 = vpack.c.b16 %v349, %v348
      %v362 = vpack.c.b16 %v351, %v350
      %v363 = vpack.c.b16 %v353, %v352
      %v364 = vpack.c.b16 %v355, %v354
      %v365 = vpack.c.b16 %v357, %v356
      %374 = vmatprep.subr.bf16.mxu0 0
      %375 = vmatpush1.bf16.msra.mxu0 %v358
      %376 = vmatprep.subr.bf16.mxu0 0
      %377 = vmatpush1.bf16.msra.mxu0 %v359
      %378 = vmatprep.subr.bf16.mxu0 0
      %379 = vmatpush1.bf16.msra.mxu0 %v360
      %380 = vmatprep.subr.bf16.mxu0 0
      %381 = vmatpush1.bf16.msra.mxu0 %v361
      %382 = vmatprep.subr.bf16.mxu0 0
      %383 = vmatpush1.bf16.msra.mxu0 %v362
      %384 = vmatprep.subr.bf16.mxu0 0
      %385 = vmatpush1.bf16.msra.mxu0 %v363
      %386 = vmatprep.subr.bf16.mxu0 0
      %387 = vmatpush1.bf16.msra.mxu0 %v364
      %388 = vmatprep.subr.bf16.mxu0 0
      %389 = vmatpush1.bf16.msra.mxu0 %v365
      %390 = vmatprep.subr.bf16.mxu0 0
      %391 = vmatpush1.bf16.msra.mxu0 0
      %392 = vmatprep.subr.bf16.mxu0 0
      %393 = vmatpush1.bf16.msra.mxu0 0
      %394 = vmatprep.subr.bf16.mxu0 0
      %395 = vmatpush1.bf16.msra.mxu0 0
      %396 = vmatprep.subr.bf16.mxu0 0
      %397 = vmatpush1.bf16.msra.mxu0 0
      %398 = vmatprep.subr.bf16.mxu0 0
      %399 = vmatpush1.bf16.msra.mxu0 0
      %400 = vmatprep.subr.bf16.mxu0 0
      %401 = vmatpush1.bf16.msra.mxu0 0
      %402 = vmatprep.subr.bf16.mxu0 0
      %403 = vmatpush1.bf16.msra.mxu0 0
      %404 = vmatprep.subr.bf16.mxu0 0
      %405 = vmatpush1.bf16.msra.mxu0 0
      %406 = vmatprep.mubr.bf16.mxu0 0
      %407 = vmatmul.mubr.bf16.gmra.mrb[0].mxu0 %v294
      %v408 = vpop.f32.mrb[0].mxu0
      %v409 = vadd.f32 %v228, %v408
      %v410 = vpop.f32.mrb[0].mxu0
      %v411 = vpop.f32.mrb[0].mxu0
      %v412 = vadd.f32 %v228, %v411
      %v413 = vpop.f32.mrb[0].mxu0
      %414 = vmatprep.mubr.bf16.mxu0 0
      %415 = vmatmul.mubr.bf16.gmra.mrb[0].mxu0 %v295
      %v416 = vpop.f32.mrb[0].mxu0
      %v417 = vadd.f32 %v228, %v416
      %v418 = vpop.f32.mrb[0].mxu0
      %v419 = vpop.f32.mrb[0].mxu0
      %v420 = vadd.f32 %v228, %v419
      %v421 = vpop.f32.mrb[0].mxu0
      %422 = vmatprep.mubr.bf16.mxu0 0
      %423 = vmatmul.mubr.bf16.gmra.mrb[0].mxu0 %v296
      %v424 = vpop.f32.mrb[0].mxu0
      %v425 = vadd.f32 %v228, %v424
      %v426 = vpop.f32.mrb[0].mxu0
      %v427 = vpop.f32.mrb[0].mxu0
      %v428 = vadd.f32 %v228, %v427
      %v429 = vpop.f32.mrb[0].mxu0
      %430 = vmatprep.mubr.bf16.mxu0 0
      %431 = vmatmul.mubr.bf16.gmra.mrb[0].mxu0 %v297
      %v432 = vpop.f32.mrb[0].mxu0
      %v433 = vadd.f32 %v228, %v432
      %v434 = vpop.f32.mrb[0].mxu0
      %v435 = vpop.f32.mrb[0].mxu0
      %v436 = vadd.f32 %v228, %v435
      %v437 = vpop.f32.mrb[0].mxu0
      %438 = vmatprep.mubr.bf16.mxu0 0
      %439 = vmatmul.mubr.bf16.gmra.mrb[0].mxu0 %v298
      %v440 = vpop.f32.mrb[0].mxu0
      %v441 = vadd.f32 %v228, %v440
      %v442 = vpop.f32.mrb[0].mxu0
      %v443 = vpop.f32.mrb[0].mxu0
      %v444 = vadd.f32 %v228, %v443
      %v445 = vpop.f32.mrb[0].mxu0
      %446 = vmatprep.mubr.bf16.mxu0 0
      %447 = vmatmul.mubr.bf16.gmra.mrb[0].mxu0 %v299
      %v448 = vpop.f32.mrb[0].mxu0
      %v449 = vadd.f32 %v228, %v448
      %v450 = vpop.f32.mrb[0].mxu0
      %v451 = vpop.f32.mrb[0].mxu0
      %v452 = vadd.f32 %v228, %v451
      %v453 = vpop.f32.mrb[0].mxu0
      %454 = vmatprep.mubr.bf16.mxu0 0
      %455 = vmatmul.mubr.bf16.gmra.mrb[0].mxu0 %v300
      %v456 = vpop.f32.mrb[0].mxu0
      %v457 = vadd.f32 %v228, %v456
      %v458 = vpop.f32.mrb[0].mxu0
      %v459 = vpop.f32.mrb[0].mxu0
      %v460 = vadd.f32 %v228, %v459
      %v461 = vpop.f32.mrb[0].mxu0
      %462 = vmatprep.mubr.bf16.mxu0 0
      %463 = vmatmul.mubr.bf16.gmra.mrb[0].mxu0 %v301
      %v464 = vpop.f32.mrb[0].mxu0
      %v465 = vadd.f32 %v228, %v464
      %v466 = vpop.f32.mrb[0].mxu0
      %v467 = vpop.f32.mrb[0].mxu0
      %v468 = vadd.f32 %v228, %v467
      %v469 = vpop.f32.mrb[0].mxu0
      %470 = vmatprep.mubr.bf16.mxu0 0
      %471 = vmatmul.mubr.bf16.gmra.mrb[0].mxu0 %v302
      %v472 = vpop.f32.mrb[0].mxu0
      %v473 = vadd.f32 %v228, %v472
      %v474 = vpop.f32.mrb[0].mxu0
      %v475 = vpop.f32.mrb[0].mxu0
      %v476 = vadd.f32 %v228, %v475
      %v477 = vpop.f32.mrb[0].mxu0
      %478 = vmatprep.mubr.bf16.mxu0 0
      %479 = vmatmul.mubr.bf16.gmra.mrb[0].mxu0 %v303
      %v480 = vpop.f32.mrb[0].mxu0
      %v481 = vadd.f32 %v228, %v480
      %v482 = vpop.f32.mrb[0].mxu0
      %v483 = vpop.f32.mrb[0].mxu0
      %v484 = vadd.f32 %v228, %v483
      %v485 = vpop.f32.mrb[0].mxu0
      %486 = vmatprep.mubr.bf16.mxu0 0
      %487 = vmatmul.mubr.bf16.gmra.mrb[0].mxu0 %v304
      %v488 = vpop.f32.mrb[0].mxu0
      %v489 = vadd.f32 %v228, %v488
      %v490 = vpop.f32.mrb[0].mxu0
      %v491 = vpop.f32.mrb[0].mxu0
      %v492 = vadd.f32 %v228, %v491
      %v493 = vpop.f32.mrb[0].mxu0
      %494 = vmatprep.mubr.bf16.mxu0 0
      %495 = vmatmul.mubr.bf16.gmra.mrb[0].mxu0 %v305
      %v496 = vpop.f32.mrb[0].mxu0
      %v497 = vadd.f32 %v228, %v496
      %v498 = vpop.f32.mrb[0].mxu0
      %v499 = vpop.f32.mrb[0].mxu0
      %v500 = vadd.f32 %v228, %v499
      %v501 = vpop.f32.mrb[0].mxu0
      %502 = vmatprep.mubr.bf16.mxu0 0
      %503 = vmatmul.mubr.bf16.gmra.mrb[0].mxu0 %v306
      %v504 = vpop.f32.mrb[0].mxu0
      %v505 = vadd.f32 %v228, %v504
      %v506 = vpop.f32.mrb[0].mxu0
      %v507 = vpop.f32.mrb[0].mxu0
      %v508 = vadd.f32 %v228, %v507
      %v509 = vpop.f32.mrb[0].mxu0
      %510 = vmatprep.mubr.bf16.mxu0 0
      %511 = vmatmul.mubr.bf16.gmra.mrb[0].mxu0 %v307
      %v512 = vpop.f32.mrb[0].mxu0
      %v513 = vadd.f32 %v228, %v512
      %v514 = vpop.f32.mrb[0].mxu0
      %v515 = vpop.f32.mrb[0].mxu0
      %v516 = vadd.f32 %v228, %v515
      %v517 = vpop.f32.mrb[0].mxu0
      %518 = vmatprep.mubr.bf16.mxu0 0
      %519 = vmatmul.mubr.bf16.gmra.mrb[0].mxu0 %v308
      %v520 = vpop.f32.mrb[0].mxu0
      %v521 = vadd.f32 %v228, %v520
      %v522 = vpop.f32.mrb[0].mxu0
      %v523 = vpop.f32.mrb[0].mxu0
      %v524 = vadd.f32 %v228, %v523
      %v525 = vpop.f32.mrb[0].mxu0
      %526 = vmatprep.mubr.bf16.mxu0 0
      %527 = vmatmul.mubr.bf16.gmra.mrb[0].mxu0 %v309
      %v528 = vpop.f32.mrb[0].mxu0
      %v529 = vadd.f32 %v228, %v528
      %v530 = vpop.f32.mrb[0].mxu0
      %v531 = vpop.f32.mrb[0].mxu0
      %v532 = vadd.f32 %v228, %v531
      %v533 = vpop.f32.mrb[0].mxu0
      %534 = vdwg.mxu0
      %v535 = vmax.f32 %v409, 0.0
      %v536 = vmax.f32 %v412, 0.0
      %v537 = vmax.f32 %v417, 0.0
      %v538 = vmax.f32 %v420, 0.0
      %v539 = vmax.f32 %v425, 0.0
      %v540 = vmax.f32 %v428, 0.0
      %v541 = vmax.f32 %v433, 0.0
      %v542 = vmax.f32 %v436, 0.0
      %v543 = vmax.f32 %v441, 0.0
      %v544 = vmax.f32 %v444, 0.0
      %v545 = vmax.f32 %v449, 0.0
      %v546 = vmax.f32 %v452, 0.0
      %v547 = vmax.f32 %v457, 0.0
      %v548 = vmax.f32 %v460, 0.0
      %v549 = vmax.f32 %v465, 0.0
      %v550 = vmax.f32 %v468, 0.0
      %v551 = vmax.f32 %v473, 0.0
      %v552 = vmax.f32 %v476, 0.0
      %v553 = vmax.f32 %v481, 0.0
      %v554 = vmax.f32 %v484, 0.0
      %v555 = vmax.f32 %v489, 0.0
      %v556 = vmax.f32 %v492, 0.0
      %v557 = vmax.f32 %v497, 0.0
      %v558 = vmax.f32 %v500, 0.0
      %v559 = vmax.f32 %v505, 0.0
      %v560 = vmax.f32 %v508, 0.0
      %v561 = vmax.f32 %v513, 0.0
      %v562 = vmax.f32 %v516, 0.0
      %v563 = vmax.f32 %v521, 0.0
      %v564 = vmax.f32 %v524, 0.0
      %v565 = vmax.f32 %v529, 0.0
      %v566 = vmax.f32 %v532, 0.0
      %v567 = vpack.c.bf16 %v536, %v535
      %v568 = vpack.c.bf16 %v538, %v537
      %v569 = vpack.c.bf16 %v540, %v539
      %v570 = vpack.c.bf16 %v542, %v541
      %v571 = vpack.c.bf16 %v544, %v543
      %v572 = vpack.c.bf16 %v546, %v545
      %v573 = vpack.c.bf16 %v548, %v547
      %v574 = vpack.c.bf16 %v550, %v549
      %v575 = vpack.c.bf16 %v552, %v551
      %v576 = vpack.c.bf16 %v554, %v553
      %v577 = vpack.c.bf16 %v556, %v555
      %v578 = vpack.c.bf16 %v558, %v557
      %v579 = vpack.c.bf16 %v560, %v559
      %v580 = vpack.c.bf16 %v562, %v561
      %v581 = vpack.c.bf16 %v564, %v563
      %v582 = vpack.c.bf16 %v566, %v565
      %v599 = vunpack.c.l.b16 %v567
      %v600 = vunpack.c.h.b16 %v567
      %v601 = vunpack.c.l.b16 %v568
      %v602 = vunpack.c.h.b16 %v568
      %v603 = vunpack.c.l.b16 %v569
      %v604 = vunpack.c.h.b16 %v569
      %v605 = vunpack.c.l.b16 %v570
      %v606 = vunpack.c.h.b16 %v570
      %v607 = vunpack.c.l.b16 %v571
      %v608 = vunpack.c.h.b16 %v571
      %v609 = vunpack.c.l.b16 %v572
      %v610 = vunpack.c.h.b16 %v572
      %v611 = vunpack.c.l.b16 %v573
      %v612 = vunpack.c.h.b16 %v573
      %v613 = vunpack.c.l.b16 %v574
      %v614 = vunpack.c.h.b16 %v574
      %v615 = vunpack.c.l.b16 %v575
      %v616 = vunpack.c.h.b16 %v575
      %v617 = vunpack.c.l.b16 %v576
      %v618 = vunpack.c.h.b16 %v576
      %v619 = vunpack.c.l.b16 %v577
      %v620 = vunpack.c.h.b16 %v577
      %v621 = vunpack.c.l.b16 %v578
      %v622 = vunpack.c.h.b16 %v578
      %v623 = vunpack.c.l.b16 %v579
      %v624 = vunpack.c.h.b16 %v579
      %v625 = vunpack.c.l.b16 %v580
      %v626 = vunpack.c.h.b16 %v580
      %v627 = vunpack.c.l.b16 %v581
      %v628 = vunpack.c.h.b16 %v581
      %v629 = vunpack.c.l.b16 %v582
      %v630 = vunpack.c.h.b16 %v582
      %v631 = vpack.c.b16 %v599, %v599
      %v632 = vpack.c.b16 %v600, %v600
      %v633 = vpack.c.b16 %v601, %v601
      %v634 = vpack.c.b16 %v602, %v602
      %v635 = vpack.c.b16 %v603, %v603
      %v636 = vpack.c.b16 %v604, %v604
      %v637 = vpack.c.b16 %v605, %v605
      %v638 = vpack.c.b16 %v606, %v606
      %v639 = vpack.c.b16 %v607, %v607
      %v640 = vpack.c.b16 %v608, %v608
      %v641 = vpack.c.b16 %v609, %v609
      %v642 = vpack.c.b16 %v610, %v610
      %v643 = vpack.c.b16 %v611, %v611
      %v644 = vpack.c.b16 %v612, %v612
      %v645 = vpack.c.b16 %v613, %v613
      %v646 = vpack.c.b16 %v614, %v614
      %v647 = vpack.c.b16 %v615, %v615
      %v648 = vpack.c.b16 %v616, %v616
      %v649 = vpack.c.b16 %v617, %v617
      %v650 = vpack.c.b16 %v618, %v618
      %v651 = vpack.c.b16 %v619, %v619
      %v652 = vpack.c.b16 %v620, %v620
      %v653 = vpack.c.b16 %v621, %v621
      %v654 = vpack.c.b16 %v622, %v622
      %v655 = vpack.c.b16 %v623, %v623
      %v656 = vpack.c.b16 %v624, %v624
      %v657 = vpack.c.b16 %v625, %v625
      %v658 = vpack.c.b16 %v626, %v626
      %v659 = vpack.c.b16 %v627, %v627
      %v660 = vpack.c.b16 %v628, %v628
      %v661 = vpack.c.b16 %v629, %v629
      %v662 = vpack.c.b16 %v630, %v630
      %695 = vst [vmem:[%s172] sm:$0xf] %v631
      %696 = vst [vmem:[%s172 + $0x4] sm:$0xf] %v632
      %697 = vst [vmem:[%s172 + $0x8] sm:$0xf] %v633
      %698 = vst [vmem:[%s172 + $0xc] sm:$0xf] %v634
      %699 = vst [vmem:[%s172 + $0x10] sm:$0xf] %v635
      %700 = vst [vmem:[%s172 + $0x14] sm:$0xf] %v636
      %701 = vst [vmem:[%s172 + $0x18] sm:$0xf] %v637
      %702 = vst [vmem:[%s172 + $0x1c] sm:$0xf] %v638
      %703 = vst [vmem:[%s172 + $0x20] sm:$0xf] %v639
      %704 = vst [vmem:[%s172 + $0x24] sm:$0xf] %v640
      %705 = vst [vmem:[%s172 + $0x28] sm:$0xf] %v641
      %706 = vst [vmem:[%s172 + $0x2c] sm:$0xf] %v642
      %707 = vst [vmem:[%s172 + $0x30] sm:$0xf] %v643
      %708 = vst [vmem:[%s172 + $0x34] sm:$0xf] %v644
      %709 = vst [vmem:[%s172 + $0x38] sm:$0xf] %v645
      %710 = vst [vmem:[%s172 + $0x3c] sm:$0xf] %v646
      %711 = vst [vmem:[%s172 + $0x40] sm:$0xf] %v647
      %712 = vst [vmem:[%s172 + $0x44] sm:$0xf] %v648
      %713 = vst [vmem:[%s172 + $0x48] sm:$0xf] %v649
      %714 = vst [vmem:[%s172 + $0x4c] sm:$0xf] %v650
      %715 = vst [vmem:[%s172 + $0x50] sm:$0xf] %v651
      %716 = vst [vmem:[%s172 + $0x54] sm:$0xf] %v652
      %717 = vst [vmem:[%s172 + $0x58] sm:$0xf] %v653
      %718 = vst [vmem:[%s172 + $0x5c] sm:$0xf] %v654
      %719 = vst [vmem:[%s172 + $0x60] sm:$0xf] %v655
      %720 = vst [vmem:[%s172 + $0x64] sm:$0xf] %v656
      %721 = vst [vmem:[%s172 + $0x68] sm:$0xf] %v657
      %722 = vst [vmem:[%s172 + $0x6c] sm:$0xf] %v658
      %723 = vst [vmem:[%s172 + $0x70] sm:$0xf] %v659
      %724 = vst [vmem:[%s172 + $0x74] sm:$0xf] %v660
      %725 = vst [vmem:[%s172 + $0x78] sm:$0xf] %v661
      %726 = vst [vmem:[%s172 + $0x7c] sm:$0xf] %v662
      %s727 = smul.u32 32, %s14
      %p728 = scmp.lt.s32.totalorder %s727, 63
      %s729 = scalar_select %p728, %s727, 63
      %s730 = smul.addr %s729, 4
      %s731 = scalar_lea.vmem %s3, %s730
      // Predicated region
      $region33: #{generalized_rcnn_forward.3} parent=31 // pred_check
        %p732 = pneg %p100
      $region34: #{generalized_rcnn_forward.3} parent=31 // pred_check_branch
        %734 = sbr.rel (%p732) target = $region36
      $region35: #{generalized_rcnn_forward.3} parent=31 // pred_region
        %s735 = smul.u32 32, %s14
      $region36: #{generalized_rcnn_forward.3} parent=31 // pred_fallthru
        _
    $region32: #{generalized_rcnn_forward.3} parent=5 // pred_fallthru
      _
    %p736 = scmp.le.s32.totalorder 2, %s9
    // Predicated region
    $region37: #{generalized_rcnn_forward.3} parent=5 // pred_check
      %p737 = pneg %p736
    $region38: #{generalized_rcnn_forward.3} parent=5 // pred_check_branch
      %739 = sbr.rel (%p737) target = $region40
    $region39: #{generalized_rcnn_forward.3} parent=5 // pred_region
      %s740 = ssub.s32 %s9, 2
      // Predicated region
      $region41: #{generalized_rcnn_forward.3} parent=39 // pred_check
        %p741 = pneg %p106
      $region42: #{generalized_rcnn_forward.3} parent=39 // pred_check_branch
        %743 = sbr.rel (%p741) target = $region44
      $region43: #{generalized_rcnn_forward.3} parent=39 // pred_region
        %s744 = smul.u32 32, %s15
        %p745 = scmp.lt.s32.totalorder %s744, 63
        %s746 = scalar_select %p745, %s744, 63
        %s747 = smul.addr %s746, 4
        %s748 = scalar_lea.vmem %s3, %s747
      $region44: #{generalized_rcnn_forward.3} parent=39 // pred_fallthru
        _
    $region40: #{generalized_rcnn_forward.3} parent=5 // pred_fallthru
      _
  $region6: #{generalized_rcnn_forward.3} parent=0 // loop_footer
    %s13 = sadd.s32 1, %s9
  $region7: #{generalized_rcnn_forward.3} parent=0 // loop_footer_branch
    %8 = sbr.rel target = $region3
  $region8: #{generalized_rcnn_forward.3} parent=0 // loop_exit
    _

// kernel: generalized_rcnn_forward.5
$region0: #{generalized_rcnn_forward.5}
  #allocation0 [shape = 'u32[]', space=smem, size = 0x4, offset = 0x4, fixed_abs, tag = 'smem constant byte address 0x4 - core index']
  #allocation1 [shape = 'u32[144,128]{1,0:T(1,128)}', space=vmem, size = 0x12000, scoped, tag = 'internal scratch']
  %s0 = inlined_call_operand.vmem [shape: bf16[8,128], index: 0, kind: input, shape index: {}]
  %s1 = inlined_call_operand.vmem [shape: bf16[2,128,128], index: 1, kind: input, shape index: {}]
  %s2 = inlined_call_operand.vmem [shape: bf16[128,128], index: 2, kind: input, shape index: {}]
  %s3 = inlined_call_operand.vmem [shape: f32[1,128], index: 3, kind: input, shape index: {}]
  %s4 = inlined_call_operand.vmem [shape: f32[2,8,128], index: 4, kind: output, shape index: {}]
  %s5 = sld [smem:[#allocation0]]
  $region49: #{generalized_rcnn_forward.5} parent=0
    _
  %s7 = ssub.s32 1, %s5
  %s8 = scalar_select 0, %s7, %s5
  loop: start=0, step=1, limit=4
  $region2: #{generalized_rcnn_forward.5} parent=0 // loop_pre_header
    _
  $region3: #{generalized_rcnn_forward.5} parent=0 // loop_header
    %s10 = sphi 0, %s14
    %p11 = scmp.ge.s32.totalorder %s10, 4
    %s18 = sphi 0, %s18
    %s20 = sphi 0, %s18
    %s21 = sphi 0, %s20
    %s35 = sphi 0, %s21
    %s41 = sphi 0, %s43
    %s44 = sphi 0, %s41
    %s45 = sphi 0, %s44
    %s61 = sphi 0, %s45
    %s65 = sphi 0, %s65
    %s67 = sphi 0, %s65
    %s68 = sphi 0, %s67
    %s82 = sphi 0, %s68
    %s86 = sphi 0, %s86
    %s88 = sphi 0, %s86
    %s89 = sphi 0, %s88
    %s103 = sphi 0, %s89
    %s109 = sphi 0, %s111
    %s112 = sphi 0, %s109
    %s113 = sphi 0, %s112
    %s129 = sphi 0, %s113
  $region4: #{generalized_rcnn_forward.5} parent=0 // loop_header_branch
    %13 = sbr.rel (%p11) target = $region8
  $region5: #{generalized_rcnn_forward.5} parent=0 // loop_body
    %s15 = ssub.s32 %s10, 1
    %s16 = ssub.s32 %s10, 2
    %s17 = sadd.s32 %s10, 1
    %s19 = sadd.s32 %s18, 1
    %p22 = scmp.eq.s32.totalorder %s10, 1
    %p23 = scmp.ne.s32.totalorder %s18, %s20
    %p24 = scmp.eq.s32.totalorder %s10, 0
    %p25 = por %p23, %p24
    %p26 = scmp.ne.s32.totalorder %s18, %s20
    %p27 = scmp.eq.s32.totalorder %s15, 1
    %p28 = por %p26, %p27
    %p29 = scmp.ne.s32.totalorder %s20, %s21
    %p30 = scmp.eq.s32.totalorder %s15, 0
    %p31 = por %p29, %p30
    %p32 = scmp.ne.s32.totalorder %s20, %s21
    %p33 = scmp.eq.s32.totalorder %s16, 1
    %p34 = por %p32, %p33
    %p36 = scmp.ne.s32.totalorder %s21, %s35
    %p37 = scmp.eq.s32.totalorder %s16, 0
    %p38 = por %p36, %p37
    %s39 = ssub.s32 %s10, %s17
    %p40 = scmp.eq.s32.totalorder %s39, 0
    %s42 = sadd.s32 %s41, 1
    %s43 = scalar_select %p40, %s41, %s42
    %p46 = pneg %p40
    %p47 = scmp.eq.s32.totalorder %s10, 1
    %p48 = por %p46, %p47
    %p49 = scmp.ne.s32.totalorder %s41, %s44
    %p50 = scmp.eq.s32.totalorder %s10, 0
    %p51 = por %p49, %p50
    %p52 = scmp.ne.s32.totalorder %s41, %s44
    %p53 = scmp.eq.s32.totalorder %s15, 1
    %p54 = por %p52, %p53
    %p55 = scmp.ne.s32.totalorder %s44, %s45
    %p56 = scmp.eq.s32.totalorder %s15, 0
    %p57 = por %p55, %p56
    %p58 = scmp.ne.s32.totalorder %s44, %s45
    %p59 = scmp.eq.s32.totalorder %s16, 1
    %p60 = por %p58, %p59
    %p62 = scmp.ne.s32.totalorder %s45, %s61
    %p63 = scmp.eq.s32.totalorder %s16, 0
    %p64 = por %p62, %p63
    %s66 = sadd.s32 %s65, 1
    %p69 = scmp.eq.s32.totalorder %s10, 1
    %p70 = scmp.ne.s32.totalorder %s65, %s67
    %p71 = scmp.eq.s32.totalorder %s10, 0
    %p72 = por %p70, %p71
    %p73 = scmp.ne.s32.totalorder %s65, %s67
    %p74 = scmp.eq.s32.totalorder %s15, 1
    %p75 = por %p73, %p74
    %p76 = scmp.ne.s32.totalorder %s67, %s68
    %p77 = scmp.eq.s32.totalorder %s15, 0
    %p78 = por %p76, %p77
    %p79 = scmp.ne.s32.totalorder %s67, %s68
    %p80 = scmp.eq.s32.totalorder %s16, 1
    %p81 = por %p79, %p80
    %p83 = scmp.ne.s32.totalorder %s68, %s82
    %p84 = scmp.eq.s32.totalorder %s16, 0
    %p85 = por %p83, %p84
    %s87 = sadd.s32 %s86, 1
    %p90 = scmp.eq.s32.totalorder %s10, 1
    %p91 = scmp.ne.s32.totalorder %s86, %s88
    %p92 = scmp.eq.s32.totalorder %s10, 0
    %p93 = por %p91, %p92
    %p94 = scmp.ne.s32.totalorder %s86, %s88
    %p95 = scmp.eq.s32.totalorder %s15, 1
    %p96 = por %p94, %p95
    %p97 = scmp.ne.s32.totalorder %s88, %s89
    %p98 = scmp.eq.s32.totalorder %s15, 0
    %p99 = por %p97, %p98
    %p100 = scmp.ne.s32.totalorder %s88, %s89
    %p101 = scmp.eq.s32.totalorder %s16, 1
    %p102 = por %p100, %p101
    %p104 = scmp.ne.s32.totalorder %s89, %s103
    %p105 = scmp.eq.s32.totalorder %s16, 0
    %p106 = por %p104, %p105
    %s107 = ssub.s32 %s10, %s17
    %p108 = scmp.eq.s32.totalorder %s107, 0
    %s110 = sadd.s32 %s109, 1
    %s111 = scalar_select %p108, %s109, %s110
    %p114 = pneg %p108
    %p115 = scmp.eq.s32.totalorder %s10, 1
    %p116 = por %p114, %p115
    %p117 = scmp.ne.s32.totalorder %s109, %s112
    %p118 = scmp.eq.s32.totalorder %s10, 0
    %p119 = por %p117, %p118
    %p120 = scmp.ne.s32.totalorder %s109, %s112
    %p121 = scmp.eq.s32.totalorder %s15, 1
    %p122 = por %p120, %p121
    %p123 = scmp.ne.s32.totalorder %s112, %s113
    %p124 = scmp.eq.s32.totalorder %s15, 0
    %p125 = por %p123, %p124
    %p126 = scmp.ne.s32.totalorder %s112, %s113
    %p127 = scmp.eq.s32.totalorder %s16, 1
    %p128 = por %p126, %p127
    %p130 = scmp.ne.s32.totalorder %s113, %s129
    %p131 = scmp.eq.s32.totalorder %s16, 0
    %p132 = por %p130, %p131
    %p133 = scmp.le.s32.totalorder 1, %s10
    %p134 = scmp.lt.s32.totalorder %s10, 3
    %p135 = pnand %p133, %p134
    %p136 = pneg %p135
    // Predicated region
    $region9: #{generalized_rcnn_forward.5} parent=5 // pred_check
      _
    $region10: #{generalized_rcnn_forward.5} parent=5 // pred_check_branch
      %138 = sbr.rel (%p135) target = $region12
    $region11: #{generalized_rcnn_forward.5} parent=5 // pred_region
      %s139 = ssub.s32 %s10, 1
      // Predicated region
      $region13: #{generalized_rcnn_forward.5} parent=11 // pred_check
        %p140 = pneg %p31
      $region14: #{generalized_rcnn_forward.5} parent=11 // pred_check_branch
        %142 = sbr.rel (%p140) target = $region16
      $region15: #{generalized_rcnn_forward.5} parent=11 // pred_region
        _
      $region16: #{generalized_rcnn_forward.5} parent=11 // pred_fallthru
        _
      // Predicated region
      $region17: #{generalized_rcnn_forward.5} parent=11 // pred_check
        %p143 = pneg %p78
      $region18: #{generalized_rcnn_forward.5} parent=11 // pred_check_branch
        %145 = sbr.rel (%p143) target = $region20
      $region19: #{generalized_rcnn_forward.5} parent=11 // pred_region
        _
      $region20: #{generalized_rcnn_forward.5} parent=11 // pred_fallthru
        _
      // Predicated region
      $region21: #{generalized_rcnn_forward.5} parent=11 // pred_check
        %p146 = pneg %p99
      $region22: #{generalized_rcnn_forward.5} parent=11 // pred_check_branch
        %148 = sbr.rel (%p146) target = $region24
      $region23: #{generalized_rcnn_forward.5} parent=11 // pred_region
        _
      $region24: #{generalized_rcnn_forward.5} parent=11 // pred_fallthru
        _
    $region12: #{generalized_rcnn_forward.5} parent=5 // pred_fallthru
      _
    %p149 = scmp.lt.s32.totalorder %s10, 2
    // Predicated region
    $region25: #{generalized_rcnn_forward.5} parent=5 // pred_check
      %p150 = pneg %p149
    $region26: #{generalized_rcnn_forward.5} parent=5 // pred_check_branch
      %152 = sbr.rel (%p150) target = $region28
    $region27: #{generalized_rcnn_forward.5} parent=5 // pred_region
      // Predicated region
      $region29: #{generalized_rcnn_forward.5} parent=27 // pred_check
        %p153 = pneg %p51
      $region30: #{generalized_rcnn_forward.5} parent=27 // pred_check_branch
        %155 = sbr.rel (%p153) target = $region32
      $region31: #{generalized_rcnn_forward.5} parent=27 // pred_region
        %p156 = scmp.lt.s32.totalorder %s10, 1
        %s157 = scalar_select %p156, %s10, 1
        %s158 = smul.addr %s157, 16
        %s159 = smul.addr %s158, 4
        %s160 = scalar_lea.vmem %s1, %s159
      $region32: #{generalized_rcnn_forward.5} parent=27 // pred_fallthru
        _
    $region28: #{generalized_rcnn_forward.5} parent=5 // pred_fallthru
      _
    %p161 = scmp.le.s32.totalorder 1, %s10
    %p162 = scmp.lt.s32.totalorder %s10, 3
    %p163 = pnand %p161, %p162
    %p164 = pneg %p163
    // Predicated region
    $region33: #{generalized_rcnn_forward.5} parent=5 // pred_check
      _
    $region34: #{generalized_rcnn_forward.5} parent=5 // pred_check_branch
      %166 = sbr.rel (%p163) target = $region36
    $region35: #{generalized_rcnn_forward.5} parent=5 // pred_region
      %s167 = ssub.s32 %s10, 1
      %p168 = pneg %p31
      %p169 = pneg %p28
      %p170 = scmp.lt.s32.totalorder %s15, 1
      %s171 = scalar_select %p170, %s15, 1
      %s172 = smul.addr %s171, 16
      %s173 = smul.addr %s172, 4
      %s174 = scalar_lea.vmem %s1, %s173
      %p175 = pneg %p57
      %p176 = pneg %p54
      %p177 = pneg %p78
      %p178 = pneg %p75
      %p179 = pneg %p99
      %p180 = pneg %p96
      %p181 = pneg %p125
      %p182 = pneg %p122
      %p183 = scmp.lt.s32.totalorder %s15, 1
      %s184 = scalar_select %p183, %s15, 1
      %s185 = smul.addr %s184, 8
      %s186 = scalar_lea.vmem %s4, %s185
      %p187 = scmp.lt.s32.totalorder %s15, 1
      %s188 = scalar_select %p187, %s15, 1
      %s189 = smul.addr %s188, 16
      %s190 = smul.addr %s189, 4
      %s191 = scalar_lea.vmem %s1, %s190
      %p192 = scmp.lt.s32.totalorder %s15, 1
      %s193 = scalar_select %p192, %s15, 1
      %s194 = smul.addr %s193, 8
      %s195 = scalar_lea.vmem %s4, %s194
      %v197 = vld [vmem:[%s0] sm:$0xf]
      %v198 = vld [vmem:[%s191] sm:$0xf]
      %v199 = vld [vmem:[%s191 + $0x4] sm:$0xf]
      %v200 = vld [vmem:[%s191 + $0x8] sm:$0xf]
      %v201 = vld [vmem:[%s191 + $0xc] sm:$0xf]
      %v202 = vld [vmem:[%s191 + $0x10] sm:$0xf]
      %v203 = vld [vmem:[%s191 + $0x14] sm:$0xf]
      %v204 = vld [vmem:[%s191 + $0x18] sm:$0xf]
      %v205 = vld [vmem:[%s191 + $0x1c] sm:$0xf]
      %v206 = vld [vmem:[%s191 + $0x20] sm:$0xf]
      %v207 = vld [vmem:[%s191 + $0x24] sm:$0xf]
      %v208 = vld [vmem:[%s191 + $0x28] sm:$0xf]
      %v209 = vld [vmem:[%s191 + $0x2c] sm:$0xf]
      %v210 = vld [vmem:[%s191 + $0x30] sm:$0xf]
      %v211 = vld [vmem:[%s191 + $0x34] sm:$0xf]
      %v212 = vld [vmem:[%s191 + $0x38] sm:$0xf]
      %v213 = vld [vmem:[%s191 + $0x3c] sm:$0xf]
      %v230 = vunpack.c.l.b16 %v198
      %v231 = vunpack.c.l.b16 %v199
      %v232 = vunpack.c.l.b16 %v200
      %v233 = vunpack.c.l.b16 %v201
      %v234 = vunpack.c.l.b16 %v202
      %v235 = vunpack.c.l.b16 %v203
      %v236 = vunpack.c.l.b16 %v204
      %v237 = vunpack.c.l.b16 %v205
      %v238 = vunpack.c.l.b16 %v206
      %v239 = vunpack.c.l.b16 %v207
      %v240 = vunpack.c.l.b16 %v208
      %v241 = vunpack.c.l.b16 %v209
      %v242 = vunpack.c.l.b16 %v210
      %v243 = vunpack.c.l.b16 %v211
      %v244 = vunpack.c.l.b16 %v212
      %v245 = vunpack.c.l.b16 %v213
      %v246 = vpack.c.b16 %v231, %v230
      %v247 = vpack.c.b16 %v233, %v232
      %v248 = vpack.c.b16 %v235, %v234
      %v249 = vpack.c.b16 %v237, %v236
      %v250 = vpack.c.b16 %v239, %v238
      %v251 = vpack.c.b16 %v241, %v240
      %v252 = vpack.c.b16 %v243, %v242
      %v253 = vpack.c.b16 %v245, %v244
      %262 = vmatprep.subr.bf16.mxu0 0
      %263 = vmatpush1.bf16.msra.mxu0 %v246
      %264 = vmatprep.subr.bf16.mxu0 0
      %265 = vmatpush1.bf16.msra.mxu0 %v247
      %266 = vmatprep.subr.bf16.mxu0 0
      %267 = vmatpush1.bf16.msra.mxu0 %v248
      %268 = vmatprep.subr.bf16.mxu0 0
      %269 = vmatpush1.bf16.msra.mxu0 %v249
      %270 = vmatprep.subr.bf16.mxu0 0
      %271 = vmatpush1.bf16.msra.mxu0 %v250
      %272 = vmatprep.subr.bf16.mxu0 0
      %273 = vmatpush1.bf16.msra.mxu0 %v251
      %274 = vmatprep.subr.bf16.mxu0 0
      %275 = vmatpush1.bf16.msra.mxu0 %v252
      %276 = vmatprep.subr.bf16.mxu0 0
      %277 = vmatpush1.bf16.msra.mxu0 %v253
      %278 = vmatprep.subr.bf16.mxu0 0
      %279 = vmatpush1.bf16.msra.mxu0 0
      %280 = vmatprep.subr.bf16.mxu0 0
      %281 = vmatpush1.bf16.msra.mxu0 0
      %282 = vmatprep.subr.bf16.mxu0 0
      %283 = vmatpush1.bf16.msra.mxu0 0
      %284 = vmatprep.subr.bf16.mxu0 0
      %285 = vmatpush1.bf16.msra.mxu0 0
      %286 = vmatprep.subr.bf16.mxu0 0
      %287 = vmatpush1.bf16.msra.mxu0 0
      %288 = vmatprep.subr.bf16.mxu0 0
      %289 = vmatpush1.bf16.msra.mxu0 0
      %290 = vmatprep.subr.bf16.mxu0 0
      %291 = vmatpush1.bf16.msra.mxu0 0
      %292 = vmatprep.subr.bf16.mxu0 0
      %293 = vmatpush1.bf16.msra.mxu0 0
      %294 = vmatprep.mubr.bf16.mxu0 0
      %295 = vmatmul.mubr.bf16.gmra.mrb[0].mxu0 %v197
      %v296 = vpop.f32.mrb[0].mxu0
      %v297 = vadd.f32 0.0, %v296
      %v298 = vpop.f32.mrb[0].mxu0
      %v299 = vpop.f32.mrb[0].mxu0
      %v300 = vpop.f32.mrb[0].mxu0
      %301 = vdwg.mxu0
      %v302 = vpack.c.bf16 %v297, %v297
      %v303 = vld [vmem:[%s2] sm:$0xf]
      %v304 = vld [vmem:[%s2 + $0x4] sm:$0xf]
      %v305 = vld [vmem:[%s2 + $0x8] sm:$0xf]
      %v306 = vld [vmem:[%s2 + $0xc] sm:$0xf]
      %v307 = vld [vmem:[%s2 + $0x10] sm:$0xf]
      %v308 = vld [vmem:[%s2 + $0x14] sm:$0xf]
      %v309 = vld [vmem:[%s2 + $0x18] sm:$0xf]
      %v310 = vld [vmem:[%s2 + $0x1c] sm:$0xf]
      %v311 = vld [vmem:[%s2 + $0x20] sm:$0xf]
      %v312 = vld [vmem:[%s2 + $0x24] sm:$0xf]
      %v313 = vld [vmem:[%s2 + $0x28] sm:$0xf]
      %v314 = vld [vmem:[%s2 + $0x2c] sm:$0xf]
      %v315 = vld [vmem:[%s2 + $0x30] sm:$0xf]
      %v316 = vld [vmem:[%s2 + $0x34] sm:$0xf]
      %v317 = vld [vmem:[%s2 + $0x38] sm:$0xf]
      %v318 = vld [vmem:[%s2 + $0x3c] sm:$0xf]
      %v319 = vld [vmem:[%s3] sm:$0x1]
      %v321 = vlaneseq
      %v322 = vshrl.u32 %v321, 7
      %v323 = vsub.s32 0, %v322
      %v324 = vrot.slane %v319, %v323
      %v342 = vunpack.c.l.b16 %v303
      %v343 = vunpack.c.l.b16 %v304
      %v344 = vunpack.c.l.b16 %v305
      %v345 = vunpack.c.l.b16 %v306
      %v346 = vunpack.c.l.b16 %v307
      %v347 = vunpack.c.l.b16 %v308
      %v348 = vunpack.c.l.b16 %v309
      %v349 = vunpack.c.l.b16 %v310
      %v350 = vunpack.c.l.b16 %v311
      %v351 = vunpack.c.l.b16 %v312
      %v352 = vunpack.c.l.b16 %v313
      %v353 = vunpack.c.l.b16 %v314
      %v354 = vunpack.c.l.b16 %v315
      %v355 = vunpack.c.l.b16 %v316
      %v356 = vunpack.c.l.b16 %v317
      %v357 = vunpack.c.l.b16 %v318
      %v358 = vpack.c.b16 %v343, %v342
      %v359 = vpack.c.b16 %v345, %v344
      %v360 = vpack.c.b16 %v347, %v346
      %v361 = vpack.c.b16 %v349, %v348
      %v362 = vpack.c.b16 %v351, %v350
      %v363 = vpack.c.b16 %v353, %v352
      %v364 = vpack.c.b16 %v355, %v354
      %v365 = vpack.c.b16 %v357, %v356
      %374 = vmatprep.subr.bf16.mxu0 0
      %375 = vmatpush1.bf16.msra.mxu0 %v358
      %376 = vmatprep.subr.bf16.mxu0 0
      %377 = vmatpush1.bf16.msra.mxu0 %v359
      %378 = vmatprep.subr.bf16.mxu0 0
      %379 = vmatpush1.bf16.msra.mxu0 %v360
      %380 = vmatprep.subr.bf16.mxu0 0
      %381 = vmatpush1.bf16.msra.mxu0 %v361
      %382 = vmatprep.subr.bf16.mxu0 0
      %383 = vmatpush1.bf16.msra.mxu0 %v362
      %384 = vmatprep.subr.bf16.mxu0 0
      %385 = vmatpush1.bf16.msra.mxu0 %v363
      %386 = vmatprep.subr.bf16.mxu0 0
      %387 = vmatpush1.bf16.msra.mxu0 %v364
      %388 = vmatprep.subr.bf16.mxu0 0
      %389 = vmatpush1.bf16.msra.mxu0 %v365
      %390 = vmatprep.subr.bf16.mxu0 0
      %391 = vmatpush1.bf16.msra.mxu0 0
      %392 = vmatprep.subr.bf16.mxu0 0
      %393 = vmatpush1.bf16.msra.mxu0 0
      %394 = vmatprep.subr.bf16.mxu0 0
      %395 = vmatpush1.bf16.msra.mxu0 0
      %396 = vmatprep.subr.bf16.mxu0 0
      %397 = vmatpush1.bf16.msra.mxu0 0
      %398 = vmatprep.subr.bf16.mxu0 0
      %399 = vmatpush1.bf16.msra.mxu0 0
      %400 = vmatprep.subr.bf16.mxu0 0
      %401 = vmatpush1.bf16.msra.mxu0 0
      %402 = vmatprep.subr.bf16.mxu0 0
      %403 = vmatpush1.bf16.msra.mxu0 0
      %404 = vmatprep.subr.bf16.mxu0 0
      %405 = vmatpush1.bf16.msra.mxu0 0
      %406 = vmatprep.mubr.bf16.mxu0 0
      %407 = vmatmul.mubr.bf16.gmra.mrb[0].mxu0 %v302
      %v408 = vpop.f32.mrb[0].mxu0
      %v409 = vadd.f32 %v324, %v408
      %v410 = vpop.f32.mrb[0].mxu0
      %v411 = vpop.f32.mrb[0].mxu0
      %v412 = vpop.f32.mrb[0].mxu0
      %413 = vdwg.mxu0
      %414 = vmax.xlane.f32.xlu0 %v409
      %v415 = vpop.xlane.xlu0 %414
      %v416 = vsub.f32 %v409, %v415
      %v417 = vmul.f32 %v416, 1.442695
      %v418 = vpow.pop %v417
      %419 = vadd.xlane.f32.xlu0 %v418
      %v420 = vpop.xlane.xlu0 %419
      %v421 = vrcp.pop %v420
      %v422 = vmul.f32 %v418, %v421
      %423 = vst [vmem:[%s195] sm:$0xff] %v422
      %p424 = scmp.lt.s32.totalorder %s15, 1
      %s425 = scalar_select %p424, %s15, 1
      %s426 = smul.addr %s425, 8
      %s427 = scalar_lea.vmem %s4, %s426
      // Predicated region
      $region37: #{generalized_rcnn_forward.5} parent=35 // pred_check
        %p428 = pneg %p122
      $region38: #{generalized_rcnn_forward.5} parent=35 // pred_check_branch
        %430 = sbr.rel (%p428) target = $region40
      $region39: #{generalized_rcnn_forward.5} parent=35 // pred_region
        _
      $region40: #{generalized_rcnn_forward.5} parent=35 // pred_fallthru
        _
    $region36: #{generalized_rcnn_forward.5} parent=5 // pred_fallthru
      _
    %p431 = scmp.le.s32.totalorder 2, %s10
    // Predicated region
    $region41: #{generalized_rcnn_forward.5} parent=5 // pred_check
      %p432 = pneg %p431
    $region42: #{generalized_rcnn_forward.5} parent=5 // pred_check_branch
      %434 = sbr.rel (%p432) target = $region44
    $region43: #{generalized_rcnn_forward.5} parent=5 // pred_region
      %s435 = ssub.s32 %s10, 2
      // Predicated region
      $region45: #{generalized_rcnn_forward.5} parent=43 // pred_check
        %p436 = pneg %p128
      $region46: #{generalized_rcnn_forward.5} parent=43 // pred_check_branch
        %438 = sbr.rel (%p436) target = $region48
      $region47: #{generalized_rcnn_forward.5} parent=43 // pred_region
        %p439 = scmp.lt.s32.totalorder %s16, 1
        %s440 = scalar_select %p439, %s16, 1
        %s441 = smul.addr %s440, 8
        %s442 = scalar_lea.vmem %s4, %s441
      $region48: #{generalized_rcnn_forward.5} parent=43 // pred_fallthru
        _
    $region44: #{generalized_rcnn_forward.5} parent=5 // pred_fallthru
      _
  $region6: #{generalized_rcnn_forward.5} parent=0 // loop_footer
    %s14 = sadd.s32 1, %s10
  $region7: #{generalized_rcnn_forward.5} parent=0 // loop_footer_branch
    %9 = sbr.rel target = $region3
  $region8: #{generalized_rcnn_forward.5} parent=0 // loop_exit
    _

// kernel: generalized_rcnn_forward.4
$region0: #{generalized_rcnn_forward.4}
  #allocation0 [shape = 'u32[]', space=smem, size = 0x4, offset = 0x4, fixed_abs, tag = 'smem constant byte address 0x4 - core index']
  #allocation1 [shape = 'u32[144,128]{1,0:T(1,128)}', space=vmem, size = 0x12000, scoped, tag = 'internal scratch']
  %s0 = inlined_call_operand.vmem [shape: bf16[128,1152], index: 0, kind: input, shape index: {}]
  %s1 = inlined_call_operand.vmem [shape: bf16[1152,128], index: 1, kind: input, shape index: {}]
  %s2 = inlined_call_operand.vmem [shape: f32[1,128], index: 2, kind: input, shape index: {}]
  %s3 = inlined_call_operand.vmem [shape: bf16[128,128], index: 3, kind: output, shape index: {}]
  %s4 = sld [smem:[#allocation0]]
  $region22: #{generalized_rcnn_forward.4} parent=0
    _
  %s6 = ssub.s32 1, %s4
  %s7 = scalar_select 0, %s6, %s4
  // Predicated region
  $region2: #{generalized_rcnn_forward.4} parent=0 // pred_check
    _
  $region3: #{generalized_rcnn_forward.4} parent=0 // pred_check_branch
    %9 = sbr.rel (0) target = $region5
  $region4: #{generalized_rcnn_forward.4} parent=0 // pred_region
    _
  $region5: #{generalized_rcnn_forward.4} parent=0 // pred_fallthru
    _
  // Predicated region
  $region6: #{generalized_rcnn_forward.4} parent=0 // pred_check
    _
  $region7: #{generalized_rcnn_forward.4} parent=0 // pred_check_branch
    %11 = sbr.rel (0) target = $region9
  $region8: #{generalized_rcnn_forward.4} parent=0 // pred_region
    _
  $region9: #{generalized_rcnn_forward.4} parent=0 // pred_fallthru
    _
  // Predicated region
  $region10: #{generalized_rcnn_forward.4} parent=0 // pred_check
    _
  $region11: #{generalized_rcnn_forward.4} parent=0 // pred_check_branch
    %13 = sbr.rel (0) target = $region13
  $region12: #{generalized_rcnn_forward.4} parent=0 // pred_region
    _
  $region13: #{generalized_rcnn_forward.4} parent=0 // pred_fallthru
    _
  %v15 = vld [vmem:[%s0] sm:$0xff]
  %v16 = vld [vmem:[%s0 + $0x8] sm:$0xff]
  %v17 = vld [vmem:[%s0 + $0x10] sm:$0xff]
  %v18 = vld [vmem:[%s0 + $0x18] sm:$0xff]
  %v19 = vld [vmem:[%s0 + $0x20] sm:$0xf]
  %v20 = vld [vmem:[%s0 + $0x24] sm:$0xff]
  %v21 = vld [vmem:[%s0 + $0x2c] sm:$0xff]
  %v22 = vld [vmem:[%s0 + $0x34] sm:$0xff]
  %v23 = vld [vmem:[%s0 + $0x3c] sm:$0xff]
  %v24 = vld [vmem:[%s0 + $0x44] sm:$0xf]
  %v25 = vld [vmem:[%s0 + $0x48] sm:$0xff]
  %v26 = vld [vmem:[%s0 + $0x50] sm:$0xff]
  %v27 = vld [vmem:[%s0 + $0x58] sm:$0xff]
  %v28 = vld [vmem:[%s0 + $0x60] sm:$0xff]
  %v29 = vld [vmem:[%s0 + $0x68] sm:$0xf]
  %v30 = vld [vmem:[%s0 + $0x6c] sm:$0xff]
  %v31 = vld [vmem:[%s0 + $0x74] sm:$0xff]
  %v32 = vld [vmem:[%s0 + $0x7c] sm:$0xff]
  %v33 = vld [vmem:[%s0 + $0x84] sm:$0xff]
  %v34 = vld [vmem:[%s0 + $0x8c] sm:$0xf]
  %v35 = vld [vmem:[%s0 + $0x90] sm:$0xff]
  %v36 = vld [vmem:[%s0 + $0x98] sm:$0xff]
  %v37 = vld [vmem:[%s0 + $0xa0] sm:$0xff]
  %v38 = vld [vmem:[%s0 + $0xa8] sm:$0xff]
  %v39 = vld [vmem:[%s0 + $0xb0] sm:$0xf]
  %v40 = vld [vmem:[%s0 + $0xb4] sm:$0xff]
  %v41 = vld [vmem:[%s0 + $0xbc] sm:$0xff]
  %v42 = vld [vmem:[%s0 + $0xc4] sm:$0xff]
  %v43 = vld [vmem:[%s0 + $0xcc] sm:$0xff]
  %v44 = vld [vmem:[%s0 + $0xd4] sm:$0xf]
  %v45 = vld [vmem:[%s0 + $0xd8] sm:$0xff]
  %v46 = vld [vmem:[%s0 + $0xe0] sm:$0xff]
  %v47 = vld [vmem:[%s0 + $0xe8] sm:$0xff]
  %v48 = vld [vmem:[%s0 + $0xf0] sm:$0xff]
  %v49 = vld [vmem:[%s0 + $0xf8] sm:$0xf]
  %v50 = vld [vmem:[%s0 + $0xfc] sm:$0xff]
  %v51 = vld [vmem:[%s0 + $0x104] sm:$0xff]
  %v52 = vld [vmem:[%s0 + $0x10c] sm:$0xff]
  %v53 = vld [vmem:[%s0 + $0x114] sm:$0xff]
  %v54 = vld [vmem:[%s0 + $0x11c] sm:$0xf]
  %v55 = vld [vmem:[%s0 + $0x120] sm:$0xff]
  %v56 = vld [vmem:[%s0 + $0x128] sm:$0xff]
  %v57 = vld [vmem:[%s0 + $0x130] sm:$0xff]
  %v58 = vld [vmem:[%s0 + $0x138] sm:$0xff]
  %v59 = vld [vmem:[%s0 + $0x140] sm:$0xf]
  %v60 = vld [vmem:[%s0 + $0x144] sm:$0xff]
  %v61 = vld [vmem:[%s0 + $0x14c] sm:$0xff]
  %v62 = vld [vmem:[%s0 + $0x154] sm:$0xff]
  %v63 = vld [vmem:[%s0 + $0x15c] sm:$0xff]
  %v64 = vld [vmem:[%s0 + $0x164] sm:$0xf]
  %v65 = vld [vmem:[%s0 + $0x168] sm:$0xff]
  %v66 = vld [vmem:[%s0 + $0x170] sm:$0xff]
  %v67 = vld [vmem:[%s0 + $0x178] sm:$0xff]
  %v68 = vld [vmem:[%s0 + $0x180] sm:$0xff]
  %v69 = vld [vmem:[%s0 + $0x188] sm:$0xf]
  %v70 = vld [vmem:[%s0 + $0x18c] sm:$0xff]
  %v71 = vld [vmem:[%s0 + $0x194] sm:$0xff]
  %v72 = vld [vmem:[%s0 + $0x19c] sm:$0xff]
  %v73 = vld [vmem:[%s0 + $0x1a4] sm:$0xff]
  %v74 = vld [vmem:[%s0 + $0x1ac] sm:$0xf]
  %v75 = vld [vmem:[%s0 + $0x1b0] sm:$0xff]
  %v76 = vld [vmem:[%s0 + $0x1b8] sm:$0xff]
  %v77 = vld [vmem:[%s0 + $0x1c0] sm:$0xff]
  %v78 = vld [vmem:[%s0 + $0x1c8] sm:$0xff]
  %v79 = vld [vmem:[%s0 + $0x1d0] sm:$0xf]
  %v80 = vld [vmem:[%s0 + $0x1d4] sm:$0xff]
  %v81 = vld [vmem:[%s0 + $0x1dc] sm:$0xff]
  %v82 = vld [vmem:[%s0 + $0x1e4] sm:$0xff]
  %v83 = vld [vmem:[%s0 + $0x1ec] sm:$0xff]
  %v84 = vld [vmem:[%s0 + $0x1f4] sm:$0xf]
  %v85 = vld [vmem:[%s0 + $0x1f8] sm:$0xff]
  %v86 = vld [vmem:[%s0 + $0x200] sm:$0xff]
  %v87 = vld [vmem:[%s0 + $0x208] sm:$0xff]
  %v88 = vld [vmem:[%s0 + $0x210] sm:$0xff]
  %v89 = vld [vmem:[%s0 + $0x218] sm:$0xf]
  %v90 = vld [vmem:[%s0 + $0x21c] sm:$0xff]
  %v91 = vld [vmem:[%s0 + $0x224] sm:$0xff]
  %v92 = vld [vmem:[%s0 + $0x22c] sm:$0xff]
  %v93 = vld [vmem:[%s0 + $0x234] sm:$0xff]
  %v94 = vld [vmem:[%s0 + $0x23c] sm:$0xf]
  %v95 = vld [vmem:[%s1] sm:$0xf]
  %v96 = vld [vmem:[%s1 + $0x4] sm:$0xf]
  %v97 = vld [vmem:[%s1 + $0x8] sm:$0xf]
  %v98 = vld [vmem:[%s1 + $0xc] sm:$0xf]
  %v99 = vld [vmem:[%s1 + $0x10] sm:$0xf]
  %v100 = vld [vmem:[%s1 + $0x14] sm:$0xf]
  %v101 = vld [vmem:[%s1 + $0x18] sm:$0xf]
  %v102 = vld [vmem:[%s1 + $0x1c] sm:$0xf]
  %v103 = vld [vmem:[%s1 + $0x20] sm:$0xf]
  %v104 = vld [vmem:[%s1 + $0x24] sm:$0xf]
  %v105 = vld [vmem:[%s1 + $0x28] sm:$0xf]
  %v106 = vld [vmem:[%s1 + $0x2c] sm:$0xf]
  %v107 = vld [vmem:[%s1 + $0x30] sm:$0xf]
  %v108 = vld [vmem:[%s1 + $0x34] sm:$0xf]
  %v109 = vld [vmem:[%s1 + $0x38] sm:$0xf]
  %v110 = vld [vmem:[%s1 + $0x3c] sm:$0xf]
  %v111 = vld [vmem:[%s1 + $0x40] sm:$0xf]
  %v112 = vld [vmem:[%s1 + $0x44] sm:$0xf]
  %v113 = vld [vmem:[%s1 + $0x48] sm:$0xf]
  %v114 = vld [vmem:[%s1 + $0x4c] sm:$0xf]
  %v115 = vld [vmem:[%s1 + $0x50] sm:$0xf]
  %v116 = vld [vmem:[%s1 + $0x54] sm:$0xf]
  %v117 = vld [vmem:[%s1 + $0x58] sm:$0xf]
  %v118 = vld [vmem:[%s1 + $0x5c] sm:$0xf]
  %v119 = vld [vmem:[%s1 + $0x60] sm:$0xf]
  %v120 = vld [vmem:[%s1 + $0x64] sm:$0xf]
  %v121 = vld [vmem:[%s1 + $0x68] sm:$0xf]
  %v122 = vld [vmem:[%s1 + $0x6c] sm:$0xf]
  %v123 = vld [vmem:[%s1 + $0x70] sm:$0xf]
  %v124 = vld [vmem:[%s1 + $0x74] sm:$0xf]
  %v125 = vld [vmem:[%s1 + $0x78] sm:$0xf]
  %v126 = vld [vmem:[%s1 + $0x7c] sm:$0xf]
  %v127 = vld [vmem:[%s1 + $0x80] sm:$0xf]
  %v128 = vld [vmem:[%s1 + $0x84] sm:$0xf]
  %v129 = vld [vmem:[%s1 + $0x88] sm:$0xf]
  %v130 = vld [vmem:[%s1 + $0x8c] sm:$0xf]
  %v131 = vld [vmem:[%s1 + $0x90] sm:$0xf]
  %v132 = vld [vmem:[%s1 + $0x94] sm:$0xf]
  %v133 = vld [vmem:[%s1 + $0x98] sm:$0xf]
  %v134 = vld [vmem:[%s1 + $0x9c] sm:$0xf]
  %v135 = vld [vmem:[%s1 + $0xa0] sm:$0xf]
  %v136 = vld [vmem:[%s1 + $0xa4] sm:$0xf]
  %v137 = vld [vmem:[%s1 + $0xa8] sm:$0xf]
  %v138 = vld [vmem:[%s1 + $0xac] sm:$0xf]
  %v139 = vld [vmem:[%s1 + $0xb0] sm:$0xf]
  %v140 = vld [vmem:[%s1 + $0xb4] sm:$0xf]
  %v141 = vld [vmem:[%s1 + $0xb8] sm:$0xf]
  %v142 = vld [vmem:[%s1 + $0xbc] sm:$0xf]
  %v143 = vld [vmem:[%s1 + $0xc0] sm:$0xf]
  %v144 = vld [vmem:[%s1 + $0xc4] sm:$0xf]
  %v145 = vld [vmem:[%s1 + $0xc8] sm:$0xf]
  %v146 = vld [vmem:[%s1 + $0xcc] sm:$0xf]
  %v147 = vld [vmem:[%s1 + $0xd0] sm:$0xf]
  %v148 = vld [vmem:[%s1 + $0xd4] sm:$0xf]
  %v149 = vld [vmem:[%s1 + $0xd8] sm:$0xf]
  %v150 = vld [vmem:[%s1 + $0xdc] sm:$0xf]
  %v151 = vld [vmem:[%s1 + $0xe0] sm:$0xf]
  %v152 = vld [vmem:[%s1 + $0xe4] sm:$0xf]
  %v153 = vld [vmem:[%s1 + $0xe8] sm:$0xf]
  %v154 = vld [vmem:[%s1 + $0xec] sm:$0xf]
  %v155 = vld [vmem:[%s1 + $0xf0] sm:$0xf]
  %v156 = vld [vmem:[%s1 + $0xf4] sm:$0xf]
  %v157 = vld [vmem:[%s1 + $0xf8] sm:$0xf]
  %v158 = vld [vmem:[%s1 + $0xfc] sm:$0xf]
  %v159 = vld [vmem:[%s1 + $0x100] sm:$0xf]
  %v160 = vld [vmem:[%s1 + $0x104] sm:$0xf]
  %v161 = vld [vmem:[%s1 + $0x108] sm:$0xf]
  %v162 = vld [vmem:[%s1 + $0x10c] sm:$0xf]
  %v163 = vld [vmem:[%s1 + $0x110] sm:$0xf]
  %v164 = vld [vmem:[%s1 + $0x114] sm:$0xf]
  %v165 = vld [vmem:[%s1 + $0x118] sm:$0xf]
  %v166 = vld [vmem:[%s1 + $0x11c] sm:$0xf]
  %v167 = vld [vmem:[%s1 + $0x120] sm:$0xf]
  %v168 = vld [vmem:[%s1 + $0x124] sm:$0xf]
  %v169 = vld [vmem:[%s1 + $0x128] sm:$0xf]
  %v170 = vld [vmem:[%s1 + $0x12c] sm:$0xf]
  %v171 = vld [vmem:[%s1 + $0x130] sm:$0xf]
  %v172 = vld [vmem:[%s1 + $0x134] sm:$0xf]
  %v173 = vld [vmem:[%s1 + $0x138] sm:$0xf]
  %v174 = vld [vmem:[%s1 + $0x13c] sm:$0xf]
  %v175 = vld [vmem:[%s1 + $0x140] sm:$0xf]
  %v176 = vld [vmem:[%s1 + $0x144] sm:$0xf]
  %v177 = vld [vmem:[%s1 + $0x148] sm:$0xf]
  %v178 = vld [vmem:[%s1 + $0x14c] sm:$0xf]
  %v179 = vld [vmem:[%s1 + $0x150] sm:$0xf]
  %v180 = vld [vmem:[%s1 + $0x154] sm:$0xf]
  %v181 = vld [vmem:[%s1 + $0x158] sm:$0xf]
  %v182 = vld [vmem:[%s1 + $0x15c] sm:$0xf]
  %v183 = vld [vmem:[%s1 + $0x160] sm:$0xf]
  %v184 = vld [vmem:[%s1 + $0x164] sm:$0xf]
  %v185 = vld [vmem:[%s1 + $0x168] sm:$0xf]
  %v186 = vld [vmem:[%s1 + $0x16c] sm:$0xf]
  %v187 = vld [vmem:[%s1 + $0x170] sm:$0xf]
  %v188 = vld [vmem:[%s1 + $0x174] sm:$0xf]
  %v189 = vld [vmem:[%s1 + $0x178] sm:$0xf]
  %v190 = vld [vmem:[%s1 + $0x17c] sm:$0xf]
  %v191 = vld [vmem:[%s1 + $0x180] sm:$0xf]
  %v192 = vld [vmem:[%s1 + $0x184] sm:$0xf]
  %v193 = vld [vmem:[%s1 + $0x188] sm:$0xf]
  %v194 = vld [vmem:[%s1 + $0x18c] sm:$0xf]
  %v195 = vld [vmem:[%s1 + $0x190] sm:$0xf]
  %v196 = vld [vmem:[%s1 + $0x194] sm:$0xf]
  %v197 = vld [vmem:[%s1 + $0x198] sm:$0xf]
  %v198 = vld [vmem:[%s1 + $0x19c] sm:$0xf]
  %v199 = vld [vmem:[%s1 + $0x1a0] sm:$0xf]
  %v200 = vld [vmem:[%s1 + $0x1a4] sm:$0xf]
  %v201 = vld [vmem:[%s1 + $0x1a8] sm:$0xf]
  %v202 = vld [vmem:[%s1 + $0x1ac] sm:$0xf]
  %v203 = vld [vmem:[%s1 + $0x1b0] sm:$0xf]
  %v204 = vld [vmem:[%s1 + $0x1b4] sm:$0xf]
  %v205 = vld [vmem:[%s1 + $0x1b8] sm:$0xf]
  %v206 = vld [vmem:[%s1 + $0x1bc] sm:$0xf]
  %v207 = vld [vmem:[%s1 + $0x1c0] sm:$0xf]
  %v208 = vld [vmem:[%s1 + $0x1c4] sm:$0xf]
  %v209 = vld [vmem:[%s1 + $0x1c8] sm:$0xf]
  %v210 = vld [vmem:[%s1 + $0x1cc] sm:$0xf]
  %v211 = vld [vmem:[%s1 + $0x1d0] sm:$0xf]
  %v212 = vld [vmem:[%s1 + $0x1d4] sm:$0xf]
  %v213 = vld [vmem:[%s1 + $0x1d8] sm:$0xf]
  %v214 = vld [vmem:[%s1 + $0x1dc] sm:$0xf]
  %v215 = vld [vmem:[%s1 + $0x1e0] sm:$0xf]
  %v216 = vld [vmem:[%s1 + $0x1e4] sm:$0xf]
  %v217 = vld [vmem:[%s1 + $0x1e8] sm:$0xf]
  %v218 = vld [vmem:[%s1 + $0x1ec] sm:$0xf]
  %v219 = vld [vmem:[%s1 + $0x1f0] sm:$0xf]
  %v220 = vld [vmem:[%s1 + $0x1f4] sm:$0xf]
  %v221 = vld [vmem:[%s1 + $0x1f8] sm:$0xf]
  %v222 = vld [vmem:[%s1 + $0x1fc] sm:$0xf]
  %v223 = vld [vmem:[%s1 + $0x200] sm:$0xf]
  %v224 = vld [vmem:[%s1 + $0x204] sm:$0xf]
  %v225 = vld [vmem:[%s1 + $0x208] sm:$0xf]
  %v226 = vld [vmem:[%s1 + $0x20c] sm:$0xf]
  %v227 = vld [vmem:[%s1 + $0x210] sm:$0xf]
  %v228 = vld [vmem:[%s1 + $0x214] sm:$0xf]
  %v229 = vld [vmem:[%s1 + $0x218] sm:$0xf]
  %v230 = vld [vmem:[%s1 + $0x21c] sm:$0xf]
  %v231 = vld [vmem:[%s1 + $0x220] sm:$0xf]
  %v232 = vld [vmem:[%s1 + $0x224] sm:$0xf]
  %v233 = vld [vmem:[%s1 + $0x228] sm:$0xf]
  %v234 = vld [vmem:[%s1 + $0x22c] sm:$0xf]
  %v235 = vld [vmem:[%s1 + $0x230] sm:$0xf]
  %v236 = vld [vmem:[%s1 + $0x234] sm:$0xf]
  %v237 = vld [vmem:[%s1 + $0x238] sm:$0xf]
  %v238 = vld [vmem:[%s1 + $0x23c] sm:$0xf]
  %v239 = vld [vmem:[%s2] sm:$0x1]
  %v241 = vlaneseq
  %v242 = vshrl.u32 %v241, 7
  %v243 = vsub.s32 0, %v242
  %v244 = vrot.slane %v239, %v243
  %v326 = vunpack.c.l.b16 %v15
  %v327 = vunpack.c.h.b16 %v15
  %v328 = vunpack.c.l.b16 %v16
  %v329 = vunpack.c.h.b16 %v16
  %v330 = vunpack.c.l.b16 %v17
  %v331 = vunpack.c.h.b16 %v17
  %v332 = vunpack.c.l.b16 %v18
  %v333 = vunpack.c.h.b16 %v18
  %v334 = vunpack.c.l.b16 %v19
  %v335 = vunpack.c.l.b16 %v20
  %v336 = vunpack.c.h.b16 %v20
  %v337 = vunpack.c.l.b16 %v21
  %v338 = vunpack.c.h.b16 %v21
  %v339 = vunpack.c.l.b16 %v22
  %v340 = vunpack.c.h.b16 %v22
  %v341 = vunpack.c.l.b16 %v23
  %v342 = vunpack.c.h.b16 %v23
  %v343 = vunpack.c.l.b16 %v24
  %v344 = vunpack.c.l.b16 %v25
  %v345 = vunpack.c.h.b16 %v25
  %v346 = vunpack.c.l.b16 %v26
  %v347 = vunpack.c.h.b16 %v26
  %v348 = vunpack.c.l.b16 %v27
  %v349 = vunpack.c.h.b16 %v27
  %v350 = vunpack.c.l.b16 %v28
  %v351 = vunpack.c.h.b16 %v28
  %v352 = vunpack.c.l.b16 %v29
  %v353 = vunpack.c.l.b16 %v30
  %v354 = vunpack.c.h.b16 %v30
  %v355 = vunpack.c.l.b16 %v31
  %v356 = vunpack.c.h.b16 %v31
  %v357 = vunpack.c.l.b16 %v32
  %v358 = vunpack.c.h.b16 %v32
  %v359 = vunpack.c.l.b16 %v33
  %v360 = vunpack.c.h.b16 %v33
  %v361 = vunpack.c.l.b16 %v34
  %v362 = vunpack.c.l.b16 %v35
  %v363 = vunpack.c.h.b16 %v35
  %v364 = vunpack.c.l.b16 %v36
  %v365 = vunpack.c.h.b16 %v36
  %v366 = vunpack.c.l.b16 %v37
  %v367 = vunpack.c.h.b16 %v37
  %v368 = vunpack.c.l.b16 %v38
  %v369 = vunpack.c.h.b16 %v38
  %v370 = vunpack.c.l.b16 %v39
  %v371 = vunpack.c.l.b16 %v40
  %v372 = vunpack.c.h.b16 %v40
  %v373 = vunpack.c.l.b16 %v41
  %v374 = vunpack.c.h.b16 %v41
  %v375 = vunpack.c.l.b16 %v42
  %v376 = vunpack.c.h.b16 %v42
  %v377 = vunpack.c.l.b16 %v43
  %v378 = vunpack.c.h.b16 %v43
  %v379 = vunpack.c.l.b16 %v44
  %v380 = vunpack.c.l.b16 %v45
  %v381 = vunpack.c.h.b16 %v45
  %v382 = vunpack.c.l.b16 %v46
  %v383 = vunpack.c.h.b16 %v46
  %v384 = vunpack.c.l.b16 %v47
  %v385 = vunpack.c.h.b16 %v47
  %v386 = vunpack.c.l.b16 %v48
  %v387 = vunpack.c.h.b16 %v48
  %v388 = vunpack.c.l.b16 %v49
  %v389 = vunpack.c.l.b16 %v50
  %v390 = vunpack.c.h.b16 %v50
  %v391 = vunpack.c.l.b16 %v51
  %v392 = vunpack.c.h.b16 %v51
  %v393 = vunpack.c.l.b16 %v52
  %v394 = vunpack.c.h.b16 %v52
  %v395 = vunpack.c.l.b16 %v53
  %v396 = vunpack.c.h.b16 %v53
  %v397 = vunpack.c.l.b16 %v54
  %v398 = vunpack.c.l.b16 %v55
  %v399 = vunpack.c.h.b16 %v55
  %v400 = vunpack.c.l.b16 %v56
  %v401 = vunpack.c.h.b16 %v56
  %v402 = vunpack.c.l.b16 %v57
  %v403 = vunpack.c.h.b16 %v57
  %v404 = vunpack.c.l.b16 %v58
  %v405 = vunpack.c.h.b16 %v58
  %v406 = vunpack.c.l.b16 %v59
  %v407 = vunpack.c.l.b16 %v60
  %v408 = vunpack.c.h.b16 %v60
  %v409 = vunpack.c.l.b16 %v61
  %v410 = vunpack.c.h.b16 %v61
  %v411 = vunpack.c.l.b16 %v62
  %v412 = vunpack.c.h.b16 %v62
  %v413 = vunpack.c.l.b16 %v63
  %v414 = vunpack.c.h.b16 %v63
  %v415 = vunpack.c.l.b16 %v64
  %v416 = vunpack.c.l.b16 %v65
  %v417 = vunpack.c.h.b16 %v65
  %v418 = vunpack.c.l.b16 %v66
  %v419 = vunpack.c.h.b16 %v66
  %v420 = vunpack.c.l.b16 %v67
  %v421 = vunpack.c.h.b16 %v67
  %v422 = vunpack.c.l.b16 %v68
  %v423 = vunpack.c.h.b16 %v68
  %v424 = vunpack.c.l.b16 %v69
  %v425 = vunpack.c.l.b16 %v70
  %v426 = vunpack.c.h.b16 %v70
  %v427 = vunpack.c.l.b16 %v71
  %v428 = vunpack.c.h.b16 %v71
  %v429 = vunpack.c.l.b16 %v72
  %v430 = vunpack.c.h.b16 %v72
  %v431 = vunpack.c.l.b16 %v73
  %v432 = vunpack.c.h.b16 %v73
  %v433 = vunpack.c.l.b16 %v74
  %v434 = vunpack.c.l.b16 %v75
  %v435 = vunpack.c.h.b16 %v75
  %v436 = vunpack.c.l.b16 %v76
  %v437 = vunpack.c.h.b16 %v76
  %v438 = vunpack.c.l.b16 %v77
  %v439 = vunpack.c.h.b16 %v77
  %v440 = vunpack.c.l.b16 %v78
  %v441 = vunpack.c.h.b16 %v78
  %v442 = vunpack.c.l.b16 %v79
  %v443 = vunpack.c.l.b16 %v80
  %v444 = vunpack.c.h.b16 %v80
  %v445 = vunpack.c.l.b16 %v81
  %v446 = vunpack.c.h.b16 %v81
  %v447 = vunpack.c.l.b16 %v82
  %v448 = vunpack.c.h.b16 %v82
  %v449 = vunpack.c.l.b16 %v83
  %v450 = vunpack.c.h.b16 %v83
  %v451 = vunpack.c.l.b16 %v84
  %v452 = vunpack.c.l.b16 %v85
  %v453 = vunpack.c.h.b16 %v85
  %v454 = vunpack.c.l.b16 %v86
  %v455 = vunpack.c.h.b16 %v86
  %v456 = vunpack.c.l.b16 %v87
  %v457 = vunpack.c.h.b16 %v87
  %v458 = vunpack.c.l.b16 %v88
  %v459 = vunpack.c.h.b16 %v88
  %v460 = vunpack.c.l.b16 %v89
  %v461 = vunpack.c.l.b16 %v90
  %v462 = vunpack.c.h.b16 %v90
  %v463 = vunpack.c.l.b16 %v91
  %v464 = vunpack.c.h.b16 %v91
  %v465 = vunpack.c.l.b16 %v92
  %v466 = vunpack.c.h.b16 %v92
  %v467 = vunpack.c.l.b16 %v93
  %v468 = vunpack.c.h.b16 %v93
  %v469 = vunpack.c.l.b16 %v94
  %v470 = vpack.c.b16 %v335, %v326
  %v471 = vpack.c.b16 %v336, %v327
  %v472 = vpack.c.b16 %v337, %v328
  %v473 = vpack.c.b16 %v338, %v329
  %v474 = vpack.c.b16 %v339, %v330
  %v475 = vpack.c.b16 %v340, %v331
  %v476 = vpack.c.b16 %v341, %v332
  %v477 = vpack.c.b16 %v342, %v333
  %v478 = vpack.c.b16 %v343, %v334
  %v479 = vpack.c.b16 %v353, %v344
  %v480 = vpack.c.b16 %v354, %v345
  %v481 = vpack.c.b16 %v355, %v346
  %v482 = vpack.c.b16 %v356, %v347
  %v483 = vpack.c.b16 %v357, %v348
  %v484 = vpack.c.b16 %v358, %v349
  %v485 = vpack.c.b16 %v359, %v350
  %v486 = vpack.c.b16 %v360, %v351
  %v487 = vpack.c.b16 %v361, %v352
  %v488 = vpack.c.b16 %v371, %v362
  %v489 = vpack.c.b16 %v372, %v363
  %v490 = vpack.c.b16 %v373, %v364
  %v491 = vpack.c.b16 %v374, %v365
  %v492 = vpack.c.b16 %v375, %v366
  %v493 = vpack.c.b16 %v376, %v367
  %v494 = vpack.c.b16 %v377, %v368
  %v495 = vpack.c.b16 %v378, %v369
  %v496 = vpack.c.b16 %v379, %v370
  %v497 = vpack.c.b16 %v389, %v380
  %v498 = vpack.c.b16 %v390, %v381
  %v499 = vpack.c.b16 %v391, %v382
  %v500 = vpack.c.b16 %v392, %v383
  %v501 = vpack.c.b16 %v393, %v384
  %v502 = vpack.c.b16 %v394, %v385
  %v503 = vpack.c.b16 %v395, %v386
  %v504 = vpack.c.b16 %v396, %v387
  %v505 = vpack.c.b16 %v397, %v388
  %v506 = vpack.c.b16 %v407, %v398
  %v507 = vpack.c.b16 %v408, %v399
  %v508 = vpack.c.b16 %v409, %v400
  %v509 = vpack.c.b16 %v410, %v401
  %v510 = vpack.c.b16 %v411, %v402
  %v511 = vpack.c.b16 %v412, %v403
  %v512 = vpack.c.b16 %v413, %v404
  %v513 = vpack.c.b16 %v414, %v405
  %v514 = vpack.c.b16 %v415, %v406
  %v515 = vpack.c.b16 %v425, %v416
  %v516 = vpack.c.b16 %v426, %v417
  %v517 = vpack.c.b16 %v427, %v418
  %v518 = vpack.c.b16 %v428, %v419
  %v519 = vpack.c.b16 %v429, %v420
  %v520 = vpack.c.b16 %v430, %v421
  %v521 = vpack.c.b16 %v431, %v422
  %v522 = vpack.c.b16 %v432, %v423
  %v523 = vpack.c.b16 %v433, %v424
  %v524 = vpack.c.b16 %v443, %v434
  %v525 = vpack.c.b16 %v444, %v435
  %v526 = vpack.c.b16 %v445, %v436
  %v527 = vpack.c.b16 %v446, %v437
  %v528 = vpack.c.b16 %v447, %v438
  %v529 = vpack.c.b16 %v448, %v439
  %v530 = vpack.c.b16 %v449, %v440
  %v531 = vpack.c.b16 %v450, %v441
  %v532 = vpack.c.b16 %v451, %v442
  %v533 = vpack.c.b16 %v461, %v452
  %v534 = vpack.c.b16 %v462, %v453
  %v535 = vpack.c.b16 %v463, %v454
  %v536 = vpack.c.b16 %v464, %v455
  %v537 = vpack.c.b16 %v465, %v456
  %v538 = vpack.c.b16 %v466, %v457
  %v539 = vpack.c.b16 %v467, %v458
  %v540 = vpack.c.b16 %v468, %v459
  %v541 = vpack.c.b16 %v469, %v460
  %v758 = vunpack.c.l.b16 %v95
  %v759 = vunpack.c.l.b16 %v96
  %v760 = vunpack.c.l.b16 %v97
  %v761 = vunpack.c.l.b16 %v98
  %v762 = vunpack.c.l.b16 %v99
  %v763 = vunpack.c.l.b16 %v100
  %v764 = vunpack.c.l.b16 %v101
  %v765 = vunpack.c.l.b16 %v102
  %v766 = vunpack.c.l.b16 %v103
  %v767 = vunpack.c.l.b16 %v104
  %v768 = vunpack.c.l.b16 %v105
  %v769 = vunpack.c.l.b16 %v106
  %v770 = vunpack.c.l.b16 %v107
  %v771 = vunpack.c.l.b16 %v108
  %v772 = vunpack.c.l.b16 %v109
  %v773 = vunpack.c.l.b16 %v110
  %v774 = vunpack.c.l.b16 %v111
  %v775 = vunpack.c.l.b16 %v112
  %v776 = vunpack.c.l.b16 %v113
  %v777 = vunpack.c.l.b16 %v114
  %v778 = vunpack.c.l.b16 %v115
  %v779 = vunpack.c.l.b16 %v116
  %v780 = vunpack.c.l.b16 %v117
  %v781 = vunpack.c.l.b16 %v118
  %v782 = vunpack.c.l.b16 %v119
  %v783 = vunpack.c.l.b16 %v120
  %v784 = vunpack.c.l.b16 %v121
  %v785 = vunpack.c.l.b16 %v122
  %v786 = vunpack.c.l.b16 %v123
  %v787 = vunpack.c.l.b16 %v124
  %v788 = vunpack.c.l.b16 %v125
  %v789 = vunpack.c.l.b16 %v126
  %v790 = vunpack.c.l.b16 %v127
  %v791 = vunpack.c.l.b16 %v128
  %v792 = vunpack.c.l.b16 %v129
  %v793 = vunpack.c.l.b16 %v130
  %v794 = vunpack.c.l.b16 %v131
  %v795 = vunpack.c.l.b16 %v132
  %v796 = vunpack.c.l.b16 %v133
  %v797 = vunpack.c.l.b16 %v134
  %v798 = vunpack.c.l.b16 %v135
  %v799 = vunpack.c.l.b16 %v136
  %v800 = vunpack.c.l.b16 %v137
  %v801 = vunpack.c.l.b16 %v138
  %v802 = vunpack.c.l.b16 %v139
  %v803 = vunpack.c.l.b16 %v140
  %v804 = vunpack.c.l.b16 %v141
  %v805 = vunpack.c.l.b16 %v142
  %v806 = vunpack.c.l.b16 %v143
  %v807 = vunpack.c.l.b16 %v144
  %v808 = vunpack.c.l.b16 %v145
  %v809 = vunpack.c.l.b16 %v146
  %v810 = vunpack.c.l.b16 %v147
  %v811 = vunpack.c.l.b16 %v148
  %v812 = vunpack.c.l.b16 %v149
  %v813 = vunpack.c.l.b16 %v150
  %v814 = vunpack.c.l.b16 %v151
  %v815 = vunpack.c.l.b16 %v152
  %v816 = vunpack.c.l.b16 %v153
  %v817 = vunpack.c.l.b16 %v154
  %v818 = vunpack.c.l.b16 %v155
  %v819 = vunpack.c.l.b16 %v156
  %v820 = vunpack.c.l.b16 %v157
  %v821 = vunpack.c.l.b16 %v158
  %v822 = vunpack.c.l.b16 %v159
  %v823 = vunpack.c.l.b16 %v160
  %v824 = vunpack.c.l.b16 %v161
  %v825 = vunpack.c.l.b16 %v162
  %v826 = vunpack.c.l.b16 %v163
  %v827 = vunpack.c.l.b16 %v164
  %v828 = vunpack.c.l.b16 %v165
  %v829 = vunpack.c.l.b16 %v166
  %v830 = vunpack.c.l.b16 %v167
  %v831 = vunpack.c.l.b16 %v168
  %v832 = vunpack.c.l.b16 %v169
  %v833 = vunpack.c.l.b16 %v170
  %v834 = vunpack.c.l.b16 %v171
  %v835 = vunpack.c.l.b16 %v172
  %v836 = vunpack.c.l.b16 %v173
  %v837 = vunpack.c.l.b16 %v174
  %v838 = vunpack.c.l.b16 %v175
  %v839 = vunpack.c.l.b16 %v176
  %v840 = vunpack.c.l.b16 %v177
  %v841 = vunpack.c.l.b16 %v178
  %v842 = vunpack.c.l.b16 %v179
  %v843 = vunpack.c.l.b16 %v180
  %v844 = vunpack.c.l.b16 %v181
  %v845 = vunpack.c.l.b16 %v182
  %v846 = vunpack.c.l.b16 %v183
  %v847 = vunpack.c.l.b16 %v184
  %v848 = vunpack.c.l.b16 %v185
  %v849 = vunpack.c.l.b16 %v186
  %v850 = vunpack.c.l.b16 %v187
  %v851 = vunpack.c.l.b16 %v188
  %v852 = vunpack.c.l.b16 %v189
  %v853 = vunpack.c.l.b16 %v190
  %v854 = vunpack.c.l.b16 %v191
  %v855 = vunpack.c.l.b16 %v192
  %v856 = vunpack.c.l.b16 %v193
  %v857 = vunpack.c.l.b16 %v194
  %v858 = vunpack.c.l.b16 %v195
  %v859 = vunpack.c.l.b16 %v196
  %v860 = vunpack.c.l.b16 %v197
  %v861 = vunpack.c.l.b16 %v198
  %v862 = vunpack.c.l.b16 %v199
  %v863 = vunpack.c.l.b16 %v200
  %v864 = vunpack.c.l.b16 %v201
  %v865 = vunpack.c.l.b16 %v202
  %v866 = vunpack.c.l.b16 %v203
  %v867 = vunpack.c.l.b16 %v204
  %v868 = vunpack.c.l.b16 %v205
  %v869 = vunpack.c.l.b16 %v206
  %v870 = vunpack.c.l.b16 %v207
  %v871 = vunpack.c.l.b16 %v208
  %v872 = vunpack.c.l.b16 %v209
  %v873 = vunpack.c.l.b16 %v210
  %v874 = vunpack.c.l.b16 %v211
  %v875 = vunpack.c.l.b16 %v212
  %v876 = vunpack.c.l.b16 %v213
  %v877 = vunpack.c.l.b16 %v214
  %v878 = vunpack.c.l.b16 %v215
  %v879 = vunpack.c.l.b16 %v216
  %v880 = vunpack.c.l.b16 %v217
  %v881 = vunpack.c.l.b16 %v218
  %v882 = vunpack.c.l.b16 %v219
  %v883 = vunpack.c.l.b16 %v220
  %v884 = vunpack.c.l.b16 %v221
  %v885 = vunpack.c.l.b16 %v222
  %v886 = vunpack.c.l.b16 %v223
  %v887 = vunpack.c.l.b16 %v224
  %v888 = vunpack.c.l.b16 %v225
  %v889 = vunpack.c.l.b16 %v226
  %v890 = vunpack.c.l.b16 %v227
  %v891 = vunpack.c.l.b16 %v228
  %v892 = vunpack.c.l.b16 %v229
  %v893 = vunpack.c.l.b16 %v230
  %v894 = vunpack.c.l.b16 %v231
  %v895 = vunpack.c.l.b16 %v232
  %v896 = vunpack.c.l.b16 %v233
  %v897 = vunpack.c.l.b16 %v234
  %v898 = vunpack.c.l.b16 %v235
  %v899 = vunpack.c.l.b16 %v236
  %v900 = vunpack.c.l.b16 %v237
  %v901 = vunpack.c.l.b16 %v238
  %v902 = vpack.c.b16 %v759, %v758
  %v903 = vpack.c.b16 %v761, %v760
  %v904 = vpack.c.b16 %v763, %v762
  %v905 = vpack.c.b16 %v765, %v764
  %v906 = vpack.c.b16 %v767, %v766
  %v907 = vpack.c.b16 %v769, %v768
  %v908 = vpack.c.b16 %v771, %v770
  %v909 = vpack.c.b16 %v773, %v772
  %v910 = vpack.c.b16 %v775, %v774
  %v911 = vpack.c.b16 %v777, %v776
  %v912 = vpack.c.b16 %v779, %v778
  %v913 = vpack.c.b16 %v781, %v780
  %v914 = vpack.c.b16 %v783, %v782
  %v915 = vpack.c.b16 %v785, %v784
  %v916 = vpack.c.b16 %v787, %v786
  %v917 = vpack.c.b16 %v789, %v788
  %v918 = vpack.c.b16 %v791, %v790
  %v919 = vpack.c.b16 %v793, %v792
  %v920 = vpack.c.b16 %v795, %v794
  %v921 = vpack.c.b16 %v797, %v796
  %v922 = vpack.c.b16 %v799, %v798
  %v923 = vpack.c.b16 %v801, %v800
  %v924 = vpack.c.b16 %v803, %v802
  %v925 = vpack.c.b16 %v805, %v804
  %v926 = vpack.c.b16 %v807, %v806
  %v927 = vpack.c.b16 %v809, %v808
  %v928 = vpack.c.b16 %v811, %v810
  %v929 = vpack.c.b16 %v813, %v812
  %v930 = vpack.c.b16 %v815, %v814
  %v931 = vpack.c.b16 %v817, %v816
  %v932 = vpack.c.b16 %v819, %v818
  %v933 = vpack.c.b16 %v821, %v820
  %v934 = vpack.c.b16 %v823, %v822
  %v935 = vpack.c.b16 %v825, %v824
  %v936 = vpack.c.b16 %v827, %v826
  %v937 = vpack.c.b16 %v829, %v828
  %v938 = vpack.c.b16 %v831, %v830
  %v939 = vpack.c.b16 %v833, %v832
  %v940 = vpack.c.b16 %v835, %v834
  %v941 = vpack.c.b16 %v837, %v836
  %v942 = vpack.c.b16 %v839, %v838
  %v943 = vpack.c.b16 %v841, %v840
  %v944 = vpack.c.b16 %v843, %v842
  %v945 = vpack.c.b16 %v845, %v844
  %v946 = vpack.c.b16 %v847, %v846
  %v947 = vpack.c.b16 %v849, %v848
  %v948 = vpack.c.b16 %v851, %v850
  %v949 = vpack.c.b16 %v853, %v852
  %v950 = vpack.c.b16 %v855, %v854
  %v951 = vpack.c.b16 %v857, %v856
  %v952 = vpack.c.b16 %v859, %v858
  %v953 = vpack.c.b16 %v861, %v860
  %v954 = vpack.c.b16 %v863, %v862
  %v955 = vpack.c.b16 %v865, %v864
  %v956 = vpack.c.b16 %v867, %v866
  %v957 = vpack.c.b16 %v869, %v868
  %v958 = vpack.c.b16 %v871, %v870
  %v959 = vpack.c.b16 %v873, %v872
  %v960 = vpack.c.b16 %v875, %v874
  %v961 = vpack.c.b16 %v877, %v876
  %v962 = vpack.c.b16 %v879, %v878
  %v963 = vpack.c.b16 %v881, %v880
  %v964 = vpack.c.b16 %v883, %v882
  %v965 = vpack.c.b16 %v885, %v884
  %v966 = vpack.c.b16 %v887, %v886
  %v967 = vpack.c.b16 %v889, %v888
  %v968 = vpack.c.b16 %v891, %v890
  %v969 = vpack.c.b16 %v893, %v892
  %v970 = vpack.c.b16 %v895, %v894
  %v971 = vpack.c.b16 %v897, %v896
  %v972 = vpack.c.b16 %v899, %v898
  %v973 = vpack.c.b16 %v901, %v900
  %1046 = vmatprep.subr.bf16.mxu0 0
  %1047 = vmatpush1.bf16.msra.mxu0 %v902
  %1048 = vmatprep.subr.bf16.mxu0 0
  %1049 = vmatpush1.bf16.msra.mxu0 %v903
  %1050 = vmatprep.subr.bf16.mxu0 0
  %1051 = vmatpush1.bf16.msra.mxu0 %v904
  %1052 = vmatprep.subr.bf16.mxu0 0
  %1053 = vmatpush1.bf16.msra.mxu0 %v905
  %1054 = vmatprep.subr.bf16.mxu0 0
  %1055 = vmatpush1.bf16.msra.mxu0 %v906
  %1056 = vmatprep.subr.bf16.mxu0 0
  %1057 = vmatpush1.bf16.msra.mxu0 %v907
  %1058 = vmatprep.subr.bf16.mxu0 0
  %1059 = vmatpush1.bf16.msra.mxu0 %v908
  %1060 = vmatprep.subr.bf16.mxu0 0
  %1061 = vmatpush1.bf16.msra.mxu0 %v909
  %1062 = vmatprep.subr.bf16.mxu0 0
  %1063 = vmatpush1.bf16.msra.mxu0 %v910
  %1064 = vmatprep.subr.bf16.mxu0 0
  %1065 = vmatpush1.bf16.msra.mxu0 %v911
  %1066 = vmatprep.subr.bf16.mxu0 0
  %1067 = vmatpush1.bf16.msra.mxu0 %v912
  %1068 = vmatprep.subr.bf16.mxu0 0
  %1069 = vmatpush1.bf16.msra.mxu0 %v913
  %1070 = vmatprep.subr.bf16.mxu0 0
  %1071 = vmatpush1.bf16.msra.mxu0 %v914
  %1072 = vmatprep.subr.bf16.mxu0 0
  %1073 = vmatpush1.bf16.msra.mxu0 %v915
  %1074 = vmatprep.subr.bf16.mxu0 0
  %1075 = vmatpush1.bf16.msra.mxu0 %v916
  %1076 = vmatprep.subr.bf16.mxu0 0
  %1077 = vmatpush1.bf16.msra.mxu0 %v917
  %1078 = vmatprep.mubr.bf16.mxu0 %v471
  %1079 = vmatmul.mubr.bf16.gmra.mrb[0].mxu0 %v470
  %v1080 = vpop.f32.mrb[0].mxu0
  %v1081 = vadd.f32 %v244, %v1080
  %v1082 = vpop.f32.mrb[0].mxu0
  %v1083 = vpop.f32.mrb[0].mxu0
  %v1084 = vadd.f32 %v244, %v1083
  %v1085 = vpop.f32.mrb[0].mxu0
  %1086 = vmatprep.mubr.bf16.mxu0 %v480
  %1087 = vmatmul.mubr.bf16.gmra.mrb[0].mxu0 %v479
  %v1088 = vpop.f32.mrb[0].mxu0
  %v1089 = vadd.f32 %v244, %v1088
  %v1090 = vpop.f32.mrb[0].mxu0
  %v1091 = vpop.f32.mrb[0].mxu0
  %v1092 = vadd.f32 %v244, %v1091
  %v1093 = vpop.f32.mrb[0].mxu0
  %1094 = vmatprep.mubr.bf16.mxu0 %v489
  %1095 = vmatmul.mubr.bf16.gmra.mrb[0].mxu0 %v488
  %v1096 = vpop.f32.mrb[0].mxu0
  %v1097 = vadd.f32 %v244, %v1096
  %v1098 = vpop.f32.mrb[0].mxu0
  %v1099 = vpop.f32.mrb[0].mxu0
  %v1100 = vadd.f32 %v244, %v1099
  %v1101 = vpop.f32.mrb[0].mxu0
  %1102 = vmatprep.mubr.bf16.mxu0 %v498
  %1103 = vmatmul.mubr.bf16.gmra.mrb[0].mxu0 %v497
  %v1104 = vpop.f32.mrb[0].mxu0
  %v1105 = vadd.f32 %v244, %v1104
  %v1106 = vpop.f32.mrb[0].mxu0
  %v1107 = vpop.f32.mrb[0].mxu0
  %v1108 = vadd.f32 %v244, %v1107
  %v1109 = vpop.f32.mrb[0].mxu0
  %1110 = vmatprep.mubr.bf16.mxu0 %v507
  %1111 = vmatmul.mubr.bf16.gmra.mrb[0].mxu0 %v506
  %v1112 = vpop.f32.mrb[0].mxu0
  %v1113 = vadd.f32 %v244, %v1112
  %v1114 = vpop.f32.mrb[0].mxu0
  %v1115 = vpop.f32.mrb[0].mxu0
  %v1116 = vadd.f32 %v244, %v1115
  %v1117 = vpop.f32.mrb[0].mxu0
  %1118 = vmatprep.mubr.bf16.mxu0 %v516
  %1119 = vmatmul.mubr.bf16.gmra.mrb[0].mxu0 %v515
  %v1120 = vpop.f32.mrb[0].mxu0
  %v1121 = vadd.f32 %v244, %v1120
  %v1122 = vpop.f32.mrb[0].mxu0
  %v1123 = vpop.f32.mrb[0].mxu0
  %v1124 = vadd.f32 %v244, %v1123
  %v1125 = vpop.f32.mrb[0].mxu0
  %1126 = vmatprep.mubr.bf16.mxu0 %v525
  %1127 = vmatmul.mubr.bf16.gmra.mrb[0].mxu0 %v524
  %v1128 = vpop.f32.mrb[0].mxu0
  %v1129 = vadd.f32 %v244, %v1128
  %v1130 = vpop.f32.mrb[0].mxu0
  %v1131 = vpop.f32.mrb[0].mxu0
  %v1132 = vadd.f32 %v244, %v1131
  %v1133 = vpop.f32.mrb[0].mxu0
  %1134 = vmatprep.mubr.bf16.mxu0 %v534
  %1135 = vmatmul.mubr.bf16.gmra.mrb[0].mxu0 %v533
  %v1136 = vpop.f32.mrb[0].mxu0
  %v1137 = vadd.f32 %v244, %v1136
  %v1138 = vpop.f32.mrb[0].mxu0
  %v1139 = vpop.f32.mrb[0].mxu0
  %v1140 = vadd.f32 %v244, %v1139
  %v1141 = vpop.f32.mrb[0].mxu0
  %1142 = vdwg.mxu0
  %1143 = vmatprep.subr.bf16.mxu0 0
  %1144 = vmatpush1.bf16.msra.mxu0 %v918
  %1145 = vmatprep.subr.bf16.mxu0 0
  %1146 = vmatpush1.bf16.msra.mxu0 %v919
  %1147 = vmatprep.subr.bf16.mxu0 0
  %1148 = vmatpush1.bf16.msra.mxu0 %v920
  %1149 = vmatprep.subr.bf16.mxu0 0
  %1150 = vmatpush1.bf16.msra.mxu0 %v921
  %1151 = vmatprep.subr.bf16.mxu0 0
  %1152 = vmatpush1.bf16.msra.mxu0 %v922
  %1153 = vmatprep.subr.bf16.mxu0 0
  %1154 = vmatpush1.bf16.msra.mxu0 %v923
  %1155 = vmatprep.subr.bf16.mxu0 0
  %1156 = vmatpush1.bf16.msra.mxu0 %v924
  %1157 = vmatprep.subr.bf16.mxu0 0
  %1158 = vmatpush1.bf16.msra.mxu0 %v925
  %1159 = vmatprep.subr.bf16.mxu0 0
  %1160 = vmatpush1.bf16.msra.mxu0 %v926
  %1161 = vmatprep.subr.bf16.mxu0 0
  %1162 = vmatpush1.bf16.msra.mxu0 %v927
  %1163 = vmatprep.subr.bf16.mxu0 0
  %1164 = vmatpush1.bf16.msra.mxu0 %v928
  %1165 = vmatprep.subr.bf16.mxu0 0
  %1166 = vmatpush1.bf16.msra.mxu0 %v929
  %1167 = vmatprep.subr.bf16.mxu0 0
  %1168 = vmatpush1.bf16.msra.mxu0 %v930
  %1169 = vmatprep.subr.bf16.mxu0 0
  %1170 = vmatpush1.bf16.msra.mxu0 %v931
  %1171 = vmatprep.subr.bf16.mxu0 0
  %1172 = vmatpush1.bf16.msra.mxu0 %v932
  %1173 = vmatprep.subr.bf16.mxu0 0
  %1174 = vmatpush1.bf16.msra.mxu0 %v933
  %1175 = vmatprep.mubr.bf16.mxu0 %v473
  %1176 = vmatmul.mubr.bf16.gmra.mrb[0].mxu0 %v472
  %v1177 = vpop.f32.mrb[0].mxu0
  %v1178 = vadd.f32 %v1081, %v1177
  %v1179 = vpop.f32.mrb[0].mxu0
  %v1180 = vpop.f32.mrb[0].mxu0
  %v1181 = vadd.f32 %v1084, %v1180
  %v1182 = vpop.f32.mrb[0].mxu0
  %1183 = vmatprep.mubr.bf16.mxu0 %v482
  %1184 = vmatmul.mubr.bf16.gmra.mrb[0].mxu0 %v481
  %v1185 = vpop.f32.mrb[0].mxu0
  %v1186 = vadd.f32 %v1089, %v1185
  %v1187 = vpop.f32.mrb[0].mxu0
  %v1188 = vpop.f32.mrb[0].mxu0
  %v1189 = vadd.f32 %v1092, %v1188
  %v1190 = vpop.f32.mrb[0].mxu0
  %1191 = vmatprep.mubr.bf16.mxu0 %v491
  %1192 = vmatmul.mubr.bf16.gmra.mrb[0].mxu0 %v490
  %v1193 = vpop.f32.mrb[0].mxu0
  %v1194 = vadd.f32 %v1097, %v1193
  %v1195 = vpop.f32.mrb[0].mxu0
  %v1196 = vpop.f32.mrb[0].mxu0
  %v1197 = vadd.f32 %v1100, %v1196
  %v1198 = vpop.f32.mrb[0].mxu0
  %1199 = vmatprep.mubr.bf16.mxu0 %v500
  %1200 = vmatmul.mubr.bf16.gmra.mrb[0].mxu0 %v499
  %v1201 = vpop.f32.mrb[0].mxu0
  %v1202 = vadd.f32 %v1105, %v1201
  %v1203 = vpop.f32.mrb[0].mxu0
  %v1204 = vpop.f32.mrb[0].mxu0
  %v1205 = vadd.f32 %v1108, %v1204
  %v1206 = vpop.f32.mrb[0].mxu0
  %1207 = vmatprep.mubr.bf16.mxu0 %v509
  %1208 = vmatmul.mubr.bf16.gmra.mrb[0].mxu0 %v508
  %v1209 = vpop.f32.mrb[0].mxu0
  %v1210 = vadd.f32 %v1113, %v1209
  %v1211 = vpop.f32.mrb[0].mxu0
  %v1212 = vpop.f32.mrb[0].mxu0
  %v1213 = vadd.f32 %v1116, %v1212
  %v1214 = vpop.f32.mrb[0].mxu0
  %1215 = vmatprep.mubr.bf16.mxu0 %v518
  %1216 = vmatmul.mubr.bf16.gmra.mrb[0].mxu0 %v517
  %v1217 = vpop.f32.mrb[0].mxu0
  %v1218 = vadd.f32 %v1121, %v1217
  %v1219 = vpop.f32.mrb[0].mxu0
  %v1220 = vpop.f32.mrb[0].mxu0
  %v1221 = vadd.f32 %v1124, %v1220
  %v1222 = vpop.f32.mrb[0].mxu0
  %1223 = vmatprep.mubr.bf16.mxu0 %v527
  %1224 = vmatmul.mubr.bf16.gmra.mrb[0].mxu0 %v526
  %v1225 = vpop.f32.mrb[0].mxu0
  %v1226 = vadd.f32 %v1129, %v1225
  %v1227 = vpop.f32.mrb[0].mxu0
  %v1228 = vpop.f32.mrb[0].mxu0
  %v1229 = vadd.f32 %v1132, %v1228
  %v1230 = vpop.f32.mrb[0].mxu0
  %1231 = vmatprep.mubr.bf16.mxu0 %v536
  %1232 = vmatmul.mubr.bf16.gmra.mrb[0].mxu0 %v535
  %v1233 = vpop.f32.mrb[0].mxu0
  %v1234 = vadd.f32 %v1137, %v1233
  %v1235 = vpop.f32.mrb[0].mxu0
  %v1236 = vpop.f32.mrb[0].mxu0
  %v1237 = vadd.f32 %v1140, %v1236
  %v1238 = vpop.f32.mrb[0].mxu0
  %1239 = vdwg.mxu0
  %1240 = vmatprep.subr.bf16.mxu0 0
  %1241 = vmatpush1.bf16.msra.mxu0 %v934
  %1242 = vmatprep.subr.bf16.mxu0 0
  %1243 = vmatpush1.bf16.msra.mxu0 %v935
  %1244 = vmatprep.subr.bf16.mxu0 0
  %1245 = vmatpush1.bf16.msra.mxu0 %v936
  %1246 = vmatprep.subr.bf16.mxu0 0
  %1247 = vmatpush1.bf16.msra.mxu0 %v937
  %1248 = vmatprep.subr.bf16.mxu0 0
  %1249 = vmatpush1.bf16.msra.mxu0 %v938
  %1250 = vmatprep.subr.bf16.mxu0 0
  %1251 = vmatpush1.bf16.msra.mxu0 %v939
  %1252 = vmatprep.subr.bf16.mxu0 0
  %1253 = vmatpush1.bf16.msra.mxu0 %v940
  %1254 = vmatprep.subr.bf16.mxu0 0
  %1255 = vmatpush1.bf16.msra.mxu0 %v941
  %1256 = vmatprep.subr.bf16.mxu0 0
  %1257 = vmatpush1.bf16.msra.mxu0 %v942
  %1258 = vmatprep.subr.bf16.mxu0 0
  %1259 = vmatpush1.bf16.msra.mxu0 %v943
  %1260 = vmatprep.subr.bf16.mxu0 0
  %1261 = vmatpush1.bf16.msra.mxu0 %v944
  %1262 = vmatprep.subr.bf16.mxu0 0
  %1263 = vmatpush1.bf16.msra.mxu0 %v945
  %1264 = vmatprep.subr.bf16.mxu0 0
  %1265 = vmatpush1.bf16.msra.mxu0 %v946
  %1266 = vmatprep.subr.bf16.mxu0 0
  %1267 = vmatpush1.bf16.msra.mxu0 %v947
  %1268 = vmatprep.subr.bf16.mxu0 0
  %1269 = vmatpush1.bf16.msra.mxu0 %v948
  %1270 = vmatprep.subr.bf16.mxu0 0
  %1271 = vmatpush1.bf16.msra.mxu0 %v949
  %1272 = vmatprep.mubr.bf16.mxu0 %v475
  %1273 = vmatmul.mubr.bf16.gmra.mrb[0].mxu0 %v474
  %v1274 = vpop.f32.mrb[0].mxu0
  %v1275 = vadd.f32 %v1178, %v1274
  %v1276 = vpop.f32.mrb[0].mxu0
  %v1277 = vpop.f32.mrb[0].mxu0
  %v1278 = vadd.f32 %v1181, %v1277
  %v1279 = vpop.f32.mrb[0].mxu0
  %1280 = vmatprep.mubr.bf16.mxu0 %v484
  %1281 = vmatmul.mubr.bf16.gmra.mrb[0].mxu0 %v483
  %v1282 = vpop.f32.mrb[0].mxu0
  %v1283 = vadd.f32 %v1186, %v1282
  %v1284 = vpop.f32.mrb[0].mxu0
  %v1285 = vpop.f32.mrb[0].mxu0
  %v1286 = vadd.f32 %v1189, %v1285
  %v1287 = vpop.f32.mrb[0].mxu0
  %1288 = vmatprep.mubr.bf16.mxu0 %v493
  %1289 = vmatmul.mubr.bf16.gmra.mrb[0].mxu0 %v492
  %v1290 = vpop.f32.mrb[0].mxu0
  %v1291 = vadd.f32 %v1194, %v1290
  %v1292 = vpop.f32.mrb[0].mxu0
  %v1293 = vpop.f32.mrb[0].mxu0
  %v1294 = vadd.f32 %v1197, %v1293
  %v1295 = vpop.f32.mrb[0].mxu0
  %1296 = vmatprep.mubr.bf16.mxu0 %v502
  %1297 = vmatmul.mubr.bf16.gmra.mrb[0].mxu0 %v501
  %v1298 = vpop.f32.mrb[0].mxu0
  %v1299 = vadd.f32 %v1202, %v1298
  %v1300 = vpop.f32.mrb[0].mxu0
  %v1301 = vpop.f32.mrb[0].mxu0
  %v1302 = vadd.f32 %v1205, %v1301
  %v1303 = vpop.f32.mrb[0].mxu0
  %1304 = vmatprep.mubr.bf16.mxu0 %v511
  %1305 = vmatmul.mubr.bf16.gmra.mrb[0].mxu0 %v510
  %v1306 = vpop.f32.mrb[0].mxu0
  %v1307 = vadd.f32 %v1210, %v1306
  %v1308 = vpop.f32.mrb[0].mxu0
  %v1309 = vpop.f32.mrb[0].mxu0
  %v1310 = vadd.f32 %v1213, %v1309
  %v1311 = vpop.f32.mrb[0].mxu0
  %1312 = vmatprep.mubr.bf16.mxu0 %v520
  %1313 = vmatmul.mubr.bf16.gmra.mrb[0].mxu0 %v519
  %v1314 = vpop.f32.mrb[0].mxu0
  %v1315 = vadd.f32 %v1218, %v1314
  %v1316 = vpop.f32.mrb[0].mxu0
  %v1317 = vpop.f32.mrb[0].mxu0
  %v1318 = vadd.f32 %v1221, %v1317
  %v1319 = vpop.f32.mrb[0].mxu0
  %1320 = vmatprep.mubr.bf16.mxu0 %v529
  %1321 = vmatmul.mubr.bf16.gmra.mrb[0].mxu0 %v528
  %v1322 = vpop.f32.mrb[0].mxu0
  %v1323 = vadd.f32 %v1226, %v1322
  %v1324 = vpop.f32.mrb[0].mxu0
  %v1325 = vpop.f32.mrb[0].mxu0
  %v1326 = vadd.f32 %v1229, %v1325
  %v1327 = vpop.f32.mrb[0].mxu0
  %1328 = vmatprep.mubr.bf16.mxu0 %v538
  %1329 = vmatmul.mubr.bf16.gmra.mrb[0].mxu0 %v537
  %v1330 = vpop.f32.mrb[0].mxu0
  %v1331 = vadd.f32 %v1234, %v1330
  %v1332 = vpop.f32.mrb[0].mxu0
  %v1333 = vpop.f32.mrb[0].mxu0
  %v1334 = vadd.f32 %v1237, %v1333
  %v1335 = vpop.f32.mrb[0].mxu0
  %1336 = vdwg.mxu0
  %1337 = vmatprep.subr.bf16.mxu0 0
  %1338 = vmatpush1.bf16.msra.mxu0 %v950
  %1339 = vmatprep.subr.bf16.mxu0 0
  %1340 = vmatpush1.bf16.msra.mxu0 %v951
  %1341 = vmatprep.subr.bf16.mxu0 0
  %1342 = vmatpush1.bf16.msra.mxu0 %v952
  %1343 = vmatprep.subr.bf16.mxu0 0
  %1344 = vmatpush1.bf16.msra.mxu0 %v953
  %1345 = vmatprep.subr.bf16.mxu0 0
  %1346 = vmatpush1.bf16.msra.mxu0 %v954
  %1347 = vmatprep.subr.bf16.mxu0 0
  %1348 = vmatpush1.bf16.msra.mxu0 %v955
  %1349 = vmatprep.subr.bf16.mxu0 0
  %1350 = vmatpush1.bf16.msra.mxu0 %v956
  %1351 = vmatprep.subr.bf16.mxu0 0
  %1352 = vmatpush1.bf16.msra.mxu0 %v957
  %1353 = vmatprep.subr.bf16.mxu0 0
  %1354 = vmatpush1.bf16.msra.mxu0 %v958
  %1355 = vmatprep.subr.bf16.mxu0 0
  %1356 = vmatpush1.bf16.msra.mxu0 %v959
  %1357 = vmatprep.subr.bf16.mxu0 0
  %1358 = vmatpush1.bf16.msra.mxu0 %v960
  %1359 = vmatprep.subr.bf16.mxu0 0
  %1360 = vmatpush1.bf16.msra.mxu0 %v961
  %1361 = vmatprep.subr.bf16.mxu0 0
  %1362 = vmatpush1.bf16.msra.mxu0 %v962
  %1363 = vmatprep.subr.bf16.mxu0 0
  %1364 = vmatpush1.bf16.msra.mxu0 %v963
  %1365 = vmatprep.subr.bf16.mxu0 0
  %1366 = vmatpush1.bf16.msra.mxu0 %v964
  %1367 = vmatprep.subr.bf16.mxu0 0
  %1368 = vmatpush1.bf16.msra.mxu0 %v965
  %1369 = vmatprep.mubr.bf16.mxu0 %v477
  %1370 = vmatmul.mubr.bf16.gmra.mrb[0].mxu0 %v476
  %v1371 = vpop.f32.mrb[0].mxu0
  %v1372 = vadd.f32 %v1275, %v1371
  %v1373 = vpop.f32.mrb[0].mxu0
  %v1374 = vpop.f32.mrb[0].mxu0
  %v1375 = vadd.f32 %v1278, %v1374
  %v1376 = vpop.f32.mrb[0].mxu0
  %1377 = vmatprep.mubr.bf16.mxu0 %v486
  %1378 = vmatmul.mubr.bf16.gmra.mrb[0].mxu0 %v485
  %v1379 = vpop.f32.mrb[0].mxu0
  %v1380 = vadd.f32 %v1283, %v1379
  %v1381 = vpop.f32.mrb[0].mxu0
  %v1382 = vpop.f32.mrb[0].mxu0
  %v1383 = vadd.f32 %v1286, %v1382
  %v1384 = vpop.f32.mrb[0].mxu0
  %1385 = vmatprep.mubr.bf16.mxu0 %v495
  %1386 = vmatmul.mubr.bf16.gmra.mrb[0].mxu0 %v494
  %v1387 = vpop.f32.mrb[0].mxu0
  %v1388 = vadd.f32 %v1291, %v1387
  %v1389 = vpop.f32.mrb[0].mxu0
  %v1390 = vpop.f32.mrb[0].mxu0
  %v1391 = vadd.f32 %v1294, %v1390
  %v1392 = vpop.f32.mrb[0].mxu0
  %1393 = vmatprep.mubr.bf16.mxu0 %v504
  %1394 = vmatmul.mubr.bf16.gmra.mrb[0].mxu0 %v503
  %v1395 = vpop.f32.mrb[0].mxu0
  %v1396 = vadd.f32 %v1299, %v1395
  %v1397 = vpop.f32.mrb[0].mxu0
  %v1398 = vpop.f32.mrb[0].mxu0
  %v1399 = vadd.f32 %v1302, %v1398
  %v1400 = vpop.f32.mrb[0].mxu0
  %1401 = vmatprep.mubr.bf16.mxu0 %v513
  %1402 = vmatmul.mubr.bf16.gmra.mrb[0].mxu0 %v512
  %v1403 = vpop.f32.mrb[0].mxu0
  %v1404 = vadd.f32 %v1307, %v1403
  %v1405 = vpop.f32.mrb[0].mxu0
  %v1406 = vpop.f32.mrb[0].mxu0
  %v1407 = vadd.f32 %v1310, %v1406
  %v1408 = vpop.f32.mrb[0].mxu0
  %1409 = vmatprep.mubr.bf16.mxu0 %v522
  %1410 = vmatmul.mubr.bf16.gmra.mrb[0].mxu0 %v521
  %v1411 = vpop.f32.mrb[0].mxu0
  %v1412 = vadd.f32 %v1315, %v1411
  %v1413 = vpop.f32.mrb[0].mxu0
  %v1414 = vpop.f32.mrb[0].mxu0
  %v1415 = vadd.f32 %v1318, %v1414
  %v1416 = vpop.f32.mrb[0].mxu0
  %1417 = vmatprep.mubr.bf16.mxu0 %v531
  %1418 = vmatmul.mubr.bf16.gmra.mrb[0].mxu0 %v530
  %v1419 = vpop.f32.mrb[0].mxu0
  %v1420 = vadd.f32 %v1323, %v1419
  %v1421 = vpop.f32.mrb[0].mxu0
  %v1422 = vpop.f32.mrb[0].mxu0
  %v1423 = vadd.f32 %v1326, %v1422
  %v1424 = vpop.f32.mrb[0].mxu0
  %1425 = vmatprep.mubr.bf16.mxu0 %v540
  %1426 = vmatmul.mubr.bf16.gmra.mrb[0].mxu0 %v539
  %v1427 = vpop.f32.mrb[0].mxu0
  %v1428 = vadd.f32 %v1331, %v1427
  %v1429 = vpop.f32.mrb[0].mxu0
  %v1430 = vpop.f32.mrb[0].mxu0
  %v1431 = vadd.f32 %v1334, %v1430
  %v1432 = vpop.f32.mrb[0].mxu0
  %1433 = vdwg.mxu0
  %1434 = vmatprep.subr.bf16.mxu0 0
  %1435 = vmatpush1.bf16.msra.mxu0 %v966
  %1436 = vmatprep.subr.bf16.mxu0 0
  %1437 = vmatpush1.bf16.msra.mxu0 %v967
  %1438 = vmatprep.subr.bf16.mxu0 0
  %1439 = vmatpush1.bf16.msra.mxu0 %v968
  %1440 = vmatprep.subr.bf16.mxu0 0
  %1441 = vmatpush1.bf16.msra.mxu0 %v969
  %1442 = vmatprep.subr.bf16.mxu0 0
  %1443 = vmatpush1.bf16.msra.mxu0 %v970
  %1444 = vmatprep.subr.bf16.mxu0 0
  %1445 = vmatpush1.bf16.msra.mxu0 %v971
  %1446 = vmatprep.subr.bf16.mxu0 0
  %1447 = vmatpush1.bf16.msra.mxu0 %v972
  %1448 = vmatprep.subr.bf16.mxu0 0
  %1449 = vmatpush1.bf16.msra.mxu0 %v973
  %1450 = vmatprep.subr.bf16.mxu0 0
  %1451 = vmatpush1.bf16.msra.mxu0 0
  %1452 = vmatprep.subr.bf16.mxu0 0
  %1453 = vmatpush1.bf16.msra.mxu0 0
  %1454 = vmatprep.subr.bf16.mxu0 0
  %1455 = vmatpush1.bf16.msra.mxu0 0
  %1456 = vmatprep.subr.bf16.mxu0 0
  %1457 = vmatpush1.bf16.msra.mxu0 0
  %1458 = vmatprep.subr.bf16.mxu0 0
  %1459 = vmatpush1.bf16.msra.mxu0 0
  %1460 = vmatprep.subr.bf16.mxu0 0
  %1461 = vmatpush1.bf16.msra.mxu0 0
  %1462 = vmatprep.subr.bf16.mxu0 0
  %1463 = vmatpush1.bf16.msra.mxu0 0
  %1464 = vmatprep.subr.bf16.mxu0 0
  %1465 = vmatpush1.bf16.msra.mxu0 0
  %1466 = vmatprep.mubr.bf16.mxu0 0
  %1467 = vmatmul.mubr.bf16.gmra.mrb[0].mxu0 %v478
  %v1468 = vpop.f32.mrb[0].mxu0
  %v1469 = vadd.f32 %v1372, %v1468
  %v1470 = vpop.f32.mrb[0].mxu0
  %v1471 = vpop.f32.mrb[0].mxu0
  %v1472 = vadd.f32 %v1375, %v1471
  %v1473 = vpop.f32.mrb[0].mxu0
  %1474 = vmatprep.mubr.bf16.mxu0 0
  %1475 = vmatmul.mubr.bf16.gmra.mrb[0].mxu0 %v487
  %v1476 = vpop.f32.mrb[0].mxu0
  %v1477 = vadd.f32 %v1380, %v1476
  %v1478 = vpop.f32.mrb[0].mxu0
  %v1479 = vpop.f32.mrb[0].mxu0
  %v1480 = vadd.f32 %v1383, %v1479
  %v1481 = vpop.f32.mrb[0].mxu0
  %1482 = vmatprep.mubr.bf16.mxu0 0
  %1483 = vmatmul.mubr.bf16.gmra.mrb[0].mxu0 %v496
  %v1484 = vpop.f32.mrb[0].mxu0
  %v1485 = vadd.f32 %v1388, %v1484
  %v1486 = vpop.f32.mrb[0].mxu0
  %v1487 = vpop.f32.mrb[0].mxu0
  %v1488 = vadd.f32 %v1391, %v1487
  %v1489 = vpop.f32.mrb[0].mxu0
  %1490 = vmatprep.mubr.bf16.mxu0 0
  %1491 = vmatmul.mubr.bf16.gmra.mrb[0].mxu0 %v505
  %v1492 = vpop.f32.mrb[0].mxu0
  %v1493 = vadd.f32 %v1396, %v1492
  %v1494 = vpop.f32.mrb[0].mxu0
  %v1495 = vpop.f32.mrb[0].mxu0
  %v1496 = vadd.f32 %v1399, %v1495
  %v1497 = vpop.f32.mrb[0].mxu0
  %1498 = vmatprep.mubr.bf16.mxu0 0
  %1499 = vmatmul.mubr.bf16.gmra.mrb[0].mxu0 %v514
  %v1500 = vpop.f32.mrb[0].mxu0
  %v1501 = vadd.f32 %v1404, %v1500
  %v1502 = vpop.f32.mrb[0].mxu0
  %v1503 = vpop.f32.mrb[0].mxu0
  %v1504 = vadd.f32 %v1407, %v1503
  %v1505 = vpop.f32.mrb[0].mxu0
  %1506 = vmatprep.mubr.bf16.mxu0 0
  %1507 = vmatmul.mubr.bf16.gmra.mrb[0].mxu0 %v523
  %v1508 = vpop.f32.mrb[0].mxu0
  %v1509 = vadd.f32 %v1412, %v1508
  %v1510 = vpop.f32.mrb[0].mxu0
  %v1511 = vpop.f32.mrb[0].mxu0
  %v1512 = vadd.f32 %v1415, %v1511
  %v1513 = vpop.f32.mrb[0].mxu0
  %1514 = vmatprep.mubr.bf16.mxu0 0
  %1515 = vmatmul.mubr.bf16.gmra.mrb[0].mxu0 %v532
  %v1516 = vpop.f32.mrb[0].mxu0
  %v1517 = vadd.f32 %v1420, %v1516
  %v1518 = vpop.f32.mrb[0].mxu0
  %v1519 = vpop.f32.mrb[0].mxu0
  %v1520 = vadd.f32 %v1423, %v1519
  %v1521 = vpop.f32.mrb[0].mxu0
  %1522 = vmatprep.mubr.bf16.mxu0 0
  %1523 = vmatmul.mubr.bf16.gmra.mrb[0].mxu0 %v541
  %v1524 = vpop.f32.mrb[0].mxu0
  %v1525 = vadd.f32 %v1428, %v1524
  %v1526 = vpop.f32.mrb[0].mxu0
  %v1527 = vpop.f32.mrb[0].mxu0
  %v1528 = vadd.f32 %v1431, %v1527
  %v1529 = vpop.f32.mrb[0].mxu0
  %1530 = vdwg.mxu0
  %v1531 = vmax.f32 %v1469, 0.0
  %v1532 = vmax.f32 %v1472, 0.0
  %v1533 = vmax.f32 %v1477, 0.0
  %v1534 = vmax.f32 %v1480, 0.0
  %v1535 = vmax.f32 %v1485, 0.0
  %v1536 = vmax.f32 %v1488, 0.0
  %v1537 = vmax.f32 %v1493, 0.0
  %v1538 = vmax.f32 %v1496, 0.0
  %v1539 = vmax.f32 %v1501, 0.0
  %v1540 = vmax.f32 %v1504, 0.0
  %v1541 = vmax.f32 %v1509, 0.0
  %v1542 = vmax.f32 %v1512, 0.0
  %v1543 = vmax.f32 %v1517, 0.0
  %v1544 = vmax.f32 %v1520, 0.0
  %v1545 = vmax.f32 %v1525, 0.0
  %v1546 = vmax.f32 %v1528, 0.0
  %v1547 = vpack.c.bf16 %v1532, %v1531
  %v1548 = vpack.c.bf16 %v1534, %v1533
  %v1549 = vpack.c.bf16 %v1536, %v1535
  %v1550 = vpack.c.bf16 %v1538, %v1537
  %v1551 = vpack.c.bf16 %v1540, %v1539
  %v1552 = vpack.c.bf16 %v1542, %v1541
  %v1553 = vpack.c.bf16 %v1544, %v1543
  %v1554 = vpack.c.bf16 %v1546, %v1545
  %v1563 = vunpack.c.l.b16 %v1547
  %v1564 = vunpack.c.h.b16 %v1547
  %v1565 = vunpack.c.l.b16 %v1548
  %v1566 = vunpack.c.h.b16 %v1548
  %v1567 = vunpack.c.l.b16 %v1549
  %v1568 = vunpack.c.h.b16 %v1549
  %v1569 = vunpack.c.l.b16 %v1550
  %v1570 = vunpack.c.h.b16 %v1550
  %v1571 = vunpack.c.l.b16 %v1551
  %v1572 = vunpack.c.h.b16 %v1551
  %v1573 = vunpack.c.l.b16 %v1552
  %v1574 = vunpack.c.h.b16 %v1552
  %v1575 = vunpack.c.l.b16 %v1553
  %v1576 = vunpack.c.h.b16 %v1553
  %v1577 = vunpack.c.l.b16 %v1554
  %v1578 = vunpack.c.h.b16 %v1554
  %v1579 = vpack.c.b16 %v1563, %v1563
  %v1580 = vpack.c.b16 %v1564, %v1564
  %v1581 = vpack.c.b16 %v1565, %v1565
  %v1582 = vpack.c.b16 %v1566, %v1566
  %v1583 = vpack.c.b16 %v1567, %v1567
  %v1584 = vpack.c.b16 %v1568, %v1568
  %v1585 = vpack.c.b16 %v1569, %v1569
  %v1586 = vpack.c.b16 %v1570, %v1570
  %v1587 = vpack.c.b16 %v1571, %v1571
  %v1588 = vpack.c.b16 %v1572, %v1572
  %v1589 = vpack.c.b16 %v1573, %v1573
  %v1590 = vpack.c.b16 %v1574, %v1574
  %v1591 = vpack.c.b16 %v1575, %v1575
  %v1592 = vpack.c.b16 %v1576, %v1576
  %v1593 = vpack.c.b16 %v1577, %v1577
  %v1594 = vpack.c.b16 %v1578, %v1578
  %1611 = vst [vmem:[%s3] sm:$0xf] %v1579
  %1612 = vst [vmem:[%s3 + $0x4] sm:$0xf] %v1580
  %1613 = vst [vmem:[%s3 + $0x8] sm:$0xf] %v1581
  %1614 = vst [vmem:[%s3 + $0xc] sm:$0xf] %v1582
  %1615 = vst [vmem:[%s3 + $0x10] sm:$0xf] %v1583
  %1616 = vst [vmem:[%s3 + $0x14] sm:$0xf] %v1584
  %1617 = vst [vmem:[%s3 + $0x18] sm:$0xf] %v1585
  %1618 = vst [vmem:[%s3 + $0x1c] sm:$0xf] %v1586
  %1619 = vst [vmem:[%s3 + $0x20] sm:$0xf] %v1587
  %1620 = vst [vmem:[%s3 + $0x24] sm:$0xf] %v1588
  %1621 = vst [vmem:[%s3 + $0x28] sm:$0xf] %v1589
  %1622 = vst [vmem:[%s3 + $0x2c] sm:$0xf] %v1590
  %1623 = vst [vmem:[%s3 + $0x30] sm:$0xf] %v1591
  %1624 = vst [vmem:[%s3 + $0x34] sm:$0xf] %v1592
  %1625 = vst [vmem:[%s3 + $0x38] sm:$0xf] %v1593
  %1626 = vst [vmem:[%s3 + $0x3c] sm:$0xf] %v1594
  // Predicated region
  $region14: #{generalized_rcnn_forward.4} parent=0 // pred_check
    _
  $region15: #{generalized_rcnn_forward.4} parent=0 // pred_check_branch
    %1628 = sbr.rel (0) target = $region17
  $region16: #{generalized_rcnn_forward.4} parent=0 // pred_region
    _
  $region17: #{generalized_rcnn_forward.4} parent=0 // pred_fallthru
    _
  // Predicated region
  $region18: #{generalized_rcnn_forward.4} parent=0 // pred_check
    _
  $region19: #{generalized_rcnn_forward.4} parent=0 // pred_check_branch
    %1630 = sbr.rel (0) target = $region21
  $region20: #{generalized_rcnn_forward.4} parent=0 // pred_region
    _
  $region21: #{generalized_rcnn_forward.4} parent=0 // pred_fallthru
    _

</llo_original>
